<compile_context>
chip_gen: v6e
topology: v6e:2x2x1
jax: 0.10.0
libtpu: 0.0.40
codegen_flags: <defaults>
</compile_context>

<pallas_src>
import functools

import jax
import jax.numpy as jnp
from jax import lax
from jax.experimental import pallas as pl
from jax.experimental.pallas import tpu as pltpu


# ---------------------------------------------------------------------------
# Parameter / filter-matrix construction (plain JAX glue)
# ---------------------------------------------------------------------------
def fspecial_gauss_1d(size, sigma):
    """1-D gaussian kernel, matches torch _fspecial_gauss_1d (returns shape (size,))."""
    coords = jnp.arange(size, dtype=jnp.float32) - (size // 2)
    g = jnp.exp(-(coords ** 2) / (2.0 * sigma ** 2))
    return g / jnp.sum(g)


def conv_matrix(g, n_in, pad):
    """Dense matrix A of shape (n_out, n_in) s.t. (A @ x) == 1-D cross-correlation
    of x with g using zero padding `pad` (valid part only)."""
    size = g.shape[0]
    n_out = n_in + 2 * pad - size + 1
    rows = jnp.arange(n_out)[:, None]
    cols = jnp.arange(n_in)[None, :]
    k = cols - rows + pad
    mask = (k >= 0) & (k < size)
    vals = jnp.take(g, jnp.clip(k, 0, size - 1))
    return jnp.where(mask, vals, 0.0).astype(jnp.float32)


# ---------------------------------------------------------------------------
# Pallas kernel: TB images per grid step, batched H-blur + flat lane-dense W-blur
# ---------------------------------------------------------------------------
def _ssim_kernel(x_ref, y_ref, ah_ref, awt_ref, o_ref, *,
                 c1, c2, tb, h, w, hc, hc_pad, wc, wc_pad, fw):
    x = x_ref[...].astype(jnp.float32)                       # (TB, H, W)
    y = y_ref[...].astype(jnp.float32)

    # H-direction blur: batched MXU matmul, A_h broadcast over the image batch
    # (hoisted once; used by all 5 gblur calls).
    ah_b = jnp.broadcast_to(ah_ref[...], (tb, hc_pad, h))    # (TB, Hc_pad, H)
    awt = awt_ref[...]                                       # (W, Wc_pad), lane-dense
    dn = (((2,), (1,)), ((0,), (0,)))                        # batched A_h @ m

    def gblur(m):                                            # (TB, H, W) -> (TB*Hc_pad, Wc_pad)
        hb = lax.dot_general(ah_b, m, dimension_numbers=dn,
                             preferred_element_type=jnp.float32)       # (TB, Hc_pad, W)
        hb2 = hb.reshape(tb * hc_pad, w)                     # layout no-op (Hc_pad % 8 == 0)
        return jnp.dot(hb2, awt, preferred_element_type=jnp.float32)   # (TB*Hc_pad, Wc_pad)

    # Keep the squared / cross terms in f32 (the sigma cancellation needs it).
    mu1 = gblur(x)
    mu2 = gblur(y)
    bxx = gblur(x * x)
    byy = gblur(y * y)
    bxy = gblur(x * y)

    mu1_sq = mu1 * mu1
    mu2_sq = mu2 * mu2
    mu12 = mu1 * mu2
    s1 = bxx - mu1_sq
    s2 = byy - mu2_sq
    s12 = bxy - mu12

    cs_map = (2.0 * s12 + c2) * pl.reciprocal(s1 + s2 + c2, approx=False)
    ssim_map = ((2.0 * mu12 + c1)
                * pl.reciprocal(mu1_sq + mu2_sq + c1, approx=False)
                * cs_map)                                    # (TB*Hc_pad, Wc_pad)

    # Mask out the lane padding (cols >= Wc) and the Hc -> Hc_pad row padding
    # (both regions would otherwise be exactly 1).
    row_in_img = lax.broadcasted_iota(
        jnp.int32, (tb, hc_pad, wc_pad), 1).reshape(tb * hc_pad, wc_pad)
    col = lax.broadcasted_iota(jnp.int32, (tb * hc_pad, wc_pad), 1)
    ssim_core = jnp.where((row_in_img < hc) & (col < wc), ssim_map, 0.0)

    # Per-image reduction: tiny in-kernel selection matmul (sums each image's rows,
    # landing per-image values on the sublane axis), then one lane reduce.
    r_idx = lax.broadcasted_iota(jnp.int32, (tb, tb * hc_pad), 1)
    b_lo = lax.broadcasted_iota(jnp.int32, (tb, tb * hc_pad), 0) * hc_pad
    sel = ((r_idx >= b_lo) & (r_idx < b_lo + hc_pad)).astype(jnp.float32)
    per_img = jnp.dot(sel, ssim_core, preferred_element_type=jnp.float32)  # (TB, Wc_pad)
    core_sum = jnp.sum(per_img, axis=1, keepdims=True)                      # (TB, 1)

    # PyTorch's per-image ssim_map is (Hc, fw); its 4 zero-padding columns are
    # exactly 1, contributing 4*Hc to the per-image sum.
    means = (core_sum + 4.0 * hc) * (1.0 / (hc * fw))
    o_ref[...] = means.reshape(1, tb, 1).astype(o_ref.dtype)


# ---------------------------------------------------------------------------
# Wrapper (equivalent of SSIM(...).forward(X, Y) with default args)
# ---------------------------------------------------------------------------
def ssim_pallas(X, Y, data_range=255.0, win_size=11, win_sigma=1.5, K=(0.01, 0.03)):
    assert X.shape == Y.shape and X.ndim == 4
    assert win_size % 2 == 1
    N, C, H, W = X.shape
    B = N * C

    # gaussian_filter hard-codes padding=2: effective zero-pad is 4 along H and
    # 2 along W, plus 2 exactly-zero output columns per side along W (ssim==1 there).
    Hc = H + 9 - win_size            # == H - 2 for win_size=11
    Wc = W + 5 - win_size            # == W - 6 for win_size=11
    final_w = Wc + 4                 # == W - 2 for win_size=11
    assert Hc >= 1 and Wc >= 1

    Hc_pad = ((Hc + 7) // 8) * 8             # sublane-aligned row padding
    Wc_pad = ((Wc + 127) // 128) * 128       # lane-dense W-blur output

    # Stream X/Y in their native dtype; cast to f32 inside the kernel.
    xb = X.reshape(B, H, W)
    yb = Y.reshape(B, H, W)
    in_item = xb.dtype.itemsize

    # ---- TB (images per grid step) from a VMEM budget that fits v7x -------------
    def vmem_bytes(tb):
        f32 = 4
        io = 2 * 2 * tb * H * W * in_item                  # x,y blocks, double-buffered
        consts = 2 * (Hc_pad * H + W * Wc_pad) * f32       # a_h_pad, a_wt (2 bufs each)
        casts = 5 * tb * H * W * f32                       # f32 casts + products
        hblur = (tb * Hc_pad * H + 5 * tb * Hc_pad * W) * f32
        maps = 11 * tb * Hc_pad * Wc_pad * f32             # 5 blurred maps + epilogue temps
        misc = (tb * tb * Hc_pad + 2 * tb * Wc_pad + 64) * f32
        return io + consts + casts + hblur + maps + misc

    budget = 40 * 1024 * 1024        # leaves headroom inside v7x's 64 MiB VMEM
    tb = 1
    for cand in range(1, B + 1):
        if B % cand:
            continue
        if B >= 2 and (B // cand) < 2:
            continue                 # keep >= 2 grid steps so both v7x TCs get work
        if cand > 1 and vmem_bytes(cand) > budget:
            continue
        tb = cand
    nt = B // tb

    # ---- constant blur matrices ---------------------------------------------------
    g = fspecial_gauss_1d(win_size, win_sigma)
    a_h = conv_matrix(g, H, 4)                                           # (Hc, H)
    a_h_pad = jnp.zeros((Hc_pad, H), jnp.float32).at[:Hc, :].set(a_h)    # zero pad rows
    a_wt = jnp.zeros((W, Wc_pad), jnp.float32).at[:, :Wc].set(conv_matrix(g, W, 2).T)

    c1 = float((K[0] * data_range) ** 2)
    c2 = float((K[1] * data_range) ** 2)

    kernel = functools.partial(_ssim_kernel, c1=c1, c2=c2, tb=tb, h=H, w=W,
                               hc=Hc, hc_pad=Hc_pad, wc=Wc, wc_pad=Wc_pad, fw=final_w)

    flops = (2 * 5 * B * Hc_pad * H * W            # batched H-blur
             + 2 * 5 * B * Hc_pad * W * Wc_pad     # flat lane-dense W-blur
             + 2 * nt * tb * (tb * Hc_pad) * Wc_pad
             + 30 * B * Hc_pad * Wc_pad)           # epilogue
    bytes_accessed = (2 * B * H * W * in_item
                      + 4 * (Hc_pad * H + W * Wc_pad) + 4 * B)

    out = pl.pallas_call(
        kernel,
        out_shape=jax.ShapeDtypeStruct((nt, tb, 1), jnp.float32),
        grid=(nt,),
        in_specs=[
            pl.BlockSpec((tb, H, W), lambda i: (i, 0, 0)),
            pl.BlockSpec((tb, H, W), lambda i: (i, 0, 0)),
            pl.BlockSpec((Hc_pad, H), lambda i: (0, 0)),
            pl.BlockSpec((W, Wc_pad), lambda i: (0, 0)),
        ],
        out_specs=pl.BlockSpec((1, tb, 1), lambda i: (i, 0, 0)),
        compiler_params=pltpu.CompilerParams(
            dimension_semantics=("parallel",),
            vmem_limit_bytes=48 * 1024 * 1024),
        cost_estimate=pl.CostEstimate(flops=int(flops), transcendentals=0,
                                      bytes_accessed=int(bytes_accessed)),
    )(xb, yb, a_h_pad, a_wt)

    # size_average=True -> mean over (N, C) of the per-channel spatial means.
    return jnp.mean(out.reshape(B))


# ---------------------------------------------------------------------------
# Pure-JAX reference (mirrors the PyTorch code, for correctness check)
# ---------------------------------------------------------------------------
def ssim_reference(X, Y, data_range=255.0, win_size=11, win_sigma=1.5, K=(0.01, 0.03)):
    N, C, H, W = X.shape
    g = fspecial_gauss_1d(win_size, win_sigma)

    def gfilter(x):
        w1 = jnp.broadcast_to(g.reshape(1, 1, 1, win_size), (C, 1, 1, win_size))
        out = lax.conv_general_dilated(
            x, w1, (1, 1), [(2, 2), (2, 2)],
            dimension_numbers=("NCHW", "OIHW", "NCHW"), feature_group_count=C)
        w2 = jnp.broadcast_to(g.reshape(1, 1, win_size, 1), (C, 1, win_size, 1))
        out = lax.conv_general_dilated(
            out, w2, (1, 1), [(2, 2), (2, 2)],
            dimension_numbers=("NCHW", "OIHW", "NCHW"), feature_group_count=C)
        return out

    C1 = (K[0] * data_range) ** 2
    C2 = (K[1] * data_range) ** 2
    mu1 = gfilter(X)
    mu2 = gfilter(Y)
    s1 = gfilter(X * X) - mu1 ** 2
    s2 = gfilter(Y * Y) - mu2 ** 2
    s12 = gfilter(X * Y) - mu1 * mu2
    cs_map = (2 * s12 + C2) / (s1 + s2 + C2)
    ssim_map = (2 * mu1 * mu2 + C1) / (mu1 ** 2 + mu2 ** 2 + C1) * cs_map
    return ssim_map.reshape(N, C, -1).mean(-1).mean()


if __name__ == "__main__":
    key = jax.random.PRNGKey(0)
    k1, k2 = jax.random.split(key)
    X = jax.random.uniform(k1, (2, 4, 16, 16), dtype=jnp.float32) * 255.0
    Y = jax.random.uniform(k2, (2, 4, 16, 16), dtype=jnp.float32) * 255.0

    out = ssim_pallas(X, Y)
    out = jax.block_until_ready(out)

    ref = ssim_reference(X, Y)
    assert jnp.allclose(out, ref, rtol=1e-4, atol=1e-4), (float(out), float(ref))
    print("KERNEL_OK")
</pallas_src>

<mosaic_0001>
module attributes {stable_mosaic.version = 11 : i64} {
  func.func @_ssim_kernel(%arg0: i32, %arg1: memref<4x16x16xf32, #tpu.memory_space<vmem>>, %arg2: memref<4x16x16xf32, #tpu.memory_space<vmem>>, %arg3: memref<16x16xf32, #tpu.memory_space<vmem>>, %arg4: memref<16x128xf32, #tpu.memory_space<vmem>>, %arg5: memref<1x4x1xf32, #tpu.memory_space<vmem>>) attributes {dimension_semantics = [#tpu.dimension_semantics<parallel>], iteration_bounds = array<i64: 2>, scalar_prefetch = 0 : i64, scratch_operands = 0 : i64, tpu.core_type = #tpu.core_type<tc>, window_params = [{transform_indices = @transform_0, window_bounds = array<i64: 4, 16, 16>}, {transform_indices = @transform_1, window_bounds = array<i64: 4, 16, 16>}, {pipeline_mode = #tpu.pipeline_mode<synchronous>, transform_indices = @transform_2, window_bounds = array<i64: 16, 16>}, {pipeline_mode = #tpu.pipeline_mode<synchronous>, transform_indices = @transform_3, window_bounds = array<i64: 16, 128>}, {transform_indices = @transform_4, window_bounds = array<i64: 1, 4, 1>}]} {
    %c0 = arith.constant 0 : index
    %c0_0 = arith.constant 0 : index
    %c0_1 = arith.constant 0 : index
    %0 = vector.load %arg1[%c0, %c0_0, %c0_1] : memref<4x16x16xf32, #tpu.memory_space<vmem>>, vector<4x16x16xf32>
    %c0_2 = arith.constant 0 : index
    %c0_3 = arith.constant 0 : index
    %c0_4 = arith.constant 0 : index
    %1 = vector.load %arg2[%c0_2, %c0_3, %c0_4] : memref<4x16x16xf32, #tpu.memory_space<vmem>>, vector<4x16x16xf32>
    %c0_5 = arith.constant 0 : index
    %c0_6 = arith.constant 0 : index
    %2 = vector.load %arg3[%c0_5, %c0_6] : memref<16x16xf32, #tpu.memory_space<vmem>>, vector<16x16xf32>
    %3 = vector.shape_cast %2 : vector<16x16xf32> to vector<1x16x16xf32>
    %4 = vector.broadcast %3 : vector<1x16x16xf32> to vector<4x16x16xf32>
    %c0_7 = arith.constant 0 : index
    %c0_8 = arith.constant 0 : index
    %5 = vector.load %arg4[%c0_7, %c0_8] : memref<16x128xf32, #tpu.memory_space<vmem>>, vector<16x128xf32>
    %cst = arith.constant dense<0.000000e+00> : vector<4x16x16xf32>
    %6 = tpu.matmul %4, %0, %cst {dimension_numbers = #tpu.dot_dimension_numbers<[2], [1], [1], [2], [0, 0, 0, 1, 1, 2], [0], [0]>} : vector<4x16x16xf32>, vector<4x16x16xf32>, vector<4x16x16xf32> -> vector<4x16x16xf32>
    %7 = vector.shape_cast %6 : vector<4x16x16xf32> to vector<64x16xf32>
    %cst_9 = arith.constant dense<0.000000e+00> : vector<64x128xf32>
    %8 = tpu.matmul %7, %5, %cst_9 {dimension_numbers = #tpu.dot_dimension_numbers<[1], [0], [0], [1], [0, 0, 1, 1], [], []>} : vector<64x16xf32>, vector<16x128xf32>, vector<64x128xf32> -> vector<64x128xf32>
    %cst_10 = arith.constant dense<0.000000e+00> : vector<4x16x16xf32>
    %9 = tpu.matmul %4, %1, %cst_10 {dimension_numbers = #tpu.dot_dimension_numbers<[2], [1], [1], [2], [0, 0, 0, 1, 1, 2], [0], [0]>} : vector<4x16x16xf32>, vector<4x16x16xf32>, vector<4x16x16xf32> -> vector<4x16x16xf32>
    %10 = vector.shape_cast %9 : vector<4x16x16xf32> to vector<64x16xf32>
    %cst_11 = arith.constant dense<0.000000e+00> : vector<64x128xf32>
    %11 = tpu.matmul %10, %5, %cst_11 {dimension_numbers = #tpu.dot_dimension_numbers<[1], [0], [0], [1], [0, 0, 1, 1], [], []>} : vector<64x16xf32>, vector<16x128xf32>, vector<64x128xf32> -> vector<64x128xf32>
    %12 = arith.mulf %0, %0 : vector<4x16x16xf32>
    %cst_12 = arith.constant dense<0.000000e+00> : vector<4x16x16xf32>
    %13 = tpu.matmul %4, %12, %cst_12 {dimension_numbers = #tpu.dot_dimension_numbers<[2], [1], [1], [2], [0, 0, 0, 1, 1, 2], [0], [0]>} : vector<4x16x16xf32>, vector<4x16x16xf32>, vector<4x16x16xf32> -> vector<4x16x16xf32>
    %14 = vector.shape_cast %13 : vector<4x16x16xf32> to vector<64x16xf32>
    %cst_13 = arith.constant dense<0.000000e+00> : vector<64x128xf32>
    %15 = tpu.matmul %14, %5, %cst_13 {dimension_numbers = #tpu.dot_dimension_numbers<[1], [0], [0], [1], [0, 0, 1, 1], [], []>} : vector<64x16xf32>, vector<16x128xf32>, vector<64x128xf32> -> vector<64x128xf32>
    %16 = arith.mulf %1, %1 : vector<4x16x16xf32>
    %cst_14 = arith.constant dense<0.000000e+00> : vector<4x16x16xf32>
    %17 = tpu.matmul %4, %16, %cst_14 {dimension_numbers = #tpu.dot_dimension_numbers<[2], [1], [1], [2], [0, 0, 0, 1, 1, 2], [0], [0]>} : vector<4x16x16xf32>, vector<4x16x16xf32>, vector<4x16x16xf32> -> vector<4x16x16xf32>
    %18 = vector.shape_cast %17 : vector<4x16x16xf32> to vector<64x16xf32>
    %cst_15 = arith.constant dense<0.000000e+00> : vector<64x128xf32>
    %19 = tpu.matmul %18, %5, %cst_15 {dimension_numbers = #tpu.dot_dimension_numbers<[1], [0], [0], [1], [0, 0, 1, 1], [], []>} : vector<64x16xf32>, vector<16x128xf32>, vector<64x128xf32> -> vector<64x128xf32>
    %20 = arith.mulf %0, %1 : vector<4x16x16xf32>
    %cst_16 = arith.constant dense<0.000000e+00> : vector<4x16x16xf32>
    %21 = tpu.matmul %4, %20, %cst_16 {dimension_numbers = #tpu.dot_dimension_numbers<[2], [1], [1], [2], [0, 0, 0, 1, 1, 2], [0], [0]>} : vector<4x16x16xf32>, vector<4x16x16xf32>, vector<4x16x16xf32> -> vector<4x16x16xf32>
    %22 = vector.shape_cast %21 : vector<4x16x16xf32> to vector<64x16xf32>
    %cst_17 = arith.constant dense<0.000000e+00> : vector<64x128xf32>
    %23 = tpu.matmul %22, %5, %cst_17 {dimension_numbers = #tpu.dot_dimension_numbers<[1], [0], [0], [1], [0, 0, 1, 1], [], []>} : vector<64x16xf32>, vector<16x128xf32>, vector<64x128xf32> -> vector<64x128xf32>
    %24 = arith.mulf %8, %8 : vector<64x128xf32>
    %25 = arith.mulf %11, %11 : vector<64x128xf32>
    %26 = arith.mulf %8, %11 : vector<64x128xf32>
    %27 = arith.subf %15, %24 : vector<64x128xf32>
    %28 = arith.subf %19, %25 : vector<64x128xf32>
    %29 = arith.subf %23, %26 : vector<64x128xf32>
    %cst_18 = arith.constant 2.000000e+00 : f32
    %30 = vector.broadcast %cst_18 : f32 to vector<64x128xf32>
    %31 = arith.mulf %30, %29 : vector<64x128xf32>
    %cst_19 = arith.constant 5.852250e+01 : f32
    %32 = vector.broadcast %cst_19 : f32 to vector<64x128xf32>
    %33 = arith.addf %31, %32 : vector<64x128xf32>
    %34 = arith.addf %27, %28 : vector<64x128xf32>
    %cst_20 = arith.constant 5.852250e+01 : f32
    %35 = vector.broadcast %cst_20 : f32 to vector<64x128xf32>
    %36 = arith.addf %34, %35 : vector<64x128xf32>
    %37 = tpu.reciprocal %36 : vector<64x128xf32> -> vector<64x128xf32>
    %38 = arith.mulf %33, %37 : vector<64x128xf32>
    %cst_21 = arith.constant 2.000000e+00 : f32
    %39 = vector.broadcast %cst_21 : f32 to vector<64x128xf32>
    %40 = arith.mulf %39, %26 : vector<64x128xf32>
    %cst_22 = arith.constant 6.502500e+00 : f32
    %41 = vector.broadcast %cst_22 : f32 to vector<64x128xf32>
    %42 = arith.addf %40, %41 : vector<64x128xf32>
    %43 = arith.addf %24, %25 : vector<64x128xf32>
    %cst_23 = arith.constant 6.502500e+00 : f32
    %44 = vector.broadcast %cst_23 : f32 to vector<64x128xf32>
    %45 = arith.addf %43, %44 : vector<64x128xf32>
    %46 = tpu.reciprocal %45 : vector<64x128xf32> -> vector<64x128xf32>
    %47 = arith.mulf %42, %46 : vector<64x128xf32>
    %48 = arith.mulf %47, %38 : vector<64x128xf32>
    %49 = tpu.iota {dimensions = array<i32: 1>} : vector<4x16x128xi32>
    %50 = vector.shape_cast %49 : vector<4x16x128xi32> to vector<64x128xi32>
    %51 = tpu.iota {dimensions = array<i32: 1>} : vector<64x128xi32>
    %c14_i32 = arith.constant 14 : i32
    %52 = vector.broadcast %c14_i32 : i32 to vector<64x128xi32>
    %53 = arith.cmpi slt, %50, %52 : vector<64x128xi32>
    %c10_i32 = arith.constant 10 : i32
    %54 = vector.broadcast %c10_i32 : i32 to vector<64x128xi32>
    %55 = arith.cmpi slt, %51, %54 : vector<64x128xi32>
    %56 = arith.andi %53, %55 : vector<64x128xi1>
    %cst_24 = arith.constant 0.000000e+00 : f32
    %57 = vector.broadcast %cst_24 : f32 to vector<64x128xf32>
    %58 = arith.select %56, %48, %57 : vector<64x128xi1>, vector<64x128xf32>
    %59 = tpu.iota {dimensions = array<i32: 1>} : vector<4x64xi32>
    %60 = tpu.iota {dimensions = array<i32: 0>} : vector<4x64xi32>
    %c16_i32 = arith.constant 16 : i32
    %61 = vector.broadcast %c16_i32 : i32 to vector<4x64xi32>
    %62 = arith.muli %60, %61 : vector<4x64xi32>
    %63 = arith.cmpi sge, %59, %62 : vector<4x64xi32>
    %c16_i32_25 = arith.constant 16 : i32
    %64 = vector.broadcast %c16_i32_25 : i32 to vector<4x64xi32>
    %65 = arith.addi %62, %64 : vector<4x64xi32>
    %66 = arith.cmpi slt, %59, %65 : vector<4x64xi32>
    %67 = arith.andi %63, %66 : vector<4x64xi1>
    %68 = arith.extui %67 : vector<4x64xi1> to vector<4x64xi32>
    %69 = arith.sitofp %68 : vector<4x64xi32> to vector<4x64xf32>
    %cst_26 = arith.constant dense<0.000000e+00> : vector<4x128xf32>
    %70 = tpu.matmul %69, %58, %cst_26 {dimension_numbers = #tpu.dot_dimension_numbers<[1], [0], [0], [1], [0, 0, 1, 1], [], []>} : vector<4x64xf32>, vector<64x128xf32>, vector<4x128xf32> -> vector<4x128xf32>
    %cst_27 = arith.constant dense<0.000000e+00> : vector<4xf32>
    %71 = vector.multi_reduction <add>, %70, %cst_27 [1] : vector<4x128xf32> to vector<4xf32>
    %72 = vector.shape_cast %71 : vector<4xf32> to vector<4x1xf32>
    %cst_28 = arith.constant 5.600000e+01 : f32
    %73 = vector.broadcast %cst_28 : f32 to vector<4x1xf32>
    %74 = arith.addf %72, %73 : vector<4x1xf32>
    %cst_29 = arith.constant 0.00510204071 : f32
    %75 = vector.broadcast %cst_29 : f32 to vector<4x1xf32>
    %76 = arith.mulf %74, %75 : vector<4x1xf32>
    %77 = vector.shape_cast %76 : vector<4x1xf32> to vector<1x4x1xf32>
    %c0_30 = arith.constant 0 : index
    %c0_31 = arith.constant 0 : index
    %c0_32 = arith.constant 0 : index
    %78 = vector.load %arg5[%c0_30, %c0_31, %c0_32] : memref<1x4x1xf32, #tpu.memory_space<vmem>>, vector<1x4x1xf32>
    tpu.vector_store %arg5[%c0_30, %c0_31, %c0_32], %77 {strides = array<i32>} : memref<1x4x1xf32, #tpu.memory_space<vmem>>, vector<1x4x1xf32>,
    return
  }
  func.func @transform_0(%arg0: i32) -> (i32, i32, i32) {
    %c0_i32 = arith.constant 0 : i32
    %c0_i32_0 = arith.constant 0 : i32
    %c0_i32_1 = arith.constant 0 : i32
    return %arg0, %c0_i32, %c0_i32_0 : i32, i32, i32
  }
  func.func @transform_1(%arg0: i32) -> (i32, i32, i32) {
    %c0_i32 = arith.constant 0 : i32
    %c0_i32_0 = arith.constant 0 : i32
    %c0_i32_1 = arith.constant 0 : i32
    return %arg0, %c0_i32, %c0_i32_0 : i32, i32, i32
  }
  func.func @transform_2(%arg0: i32) -> (i32, i32) {
    %c0_i32 = arith.constant 0 : i32
    %c0_i32_0 = arith.constant 0 : i32
    %c0_i32_1 = arith.constant 0 : i32
    return %c0_i32, %c0_i32_0 : i32, i32
  }
  func.func @transform_3(%arg0: i32) -> (i32, i32) {
    %c0_i32 = arith.constant 0 : i32
    %c0_i32_0 = arith.constant 0 : i32
    %c0_i32_1 = arith.constant 0 : i32
    return %c0_i32, %c0_i32_0 : i32, i32
  }
  func.func @transform_4(%arg0: i32) -> (i32, i32, i32) {
    %c0_i32 = arith.constant 0 : i32
    %c0_i32_0 = arith.constant 0 : i32
    %c0_i32_1 = arith.constant 0 : i32
    return %arg0, %c0_i32, %c0_i32_0 : i32, i32, i32
  }
}

</mosaic_0001>

<llo_original>
// kernel: tpu_custom_call.1
$region0: #{tpu_custom_call.1}
  #allocation0 [shape = 'u32[]', space=smem, size = 0x4, offset = 0x4, fixed_abs, tag = 'smem constant byte address 0x4 - core index']
  #allocation1 [shape = 'u32[144,128]{1,0:T(1,128)}', space=vmem, size = 0x12000, scoped, tag = 'internal scratch']
  %s0 = inlined_call_operand.hbm [shape: f32[8,16,16], index: 0, kind: input, shape index: {}]
  %s1 = inlined_call_operand.hbm [shape: f32[8,16,16], index: 1, kind: input, shape index: {}]
  %s2 = inlined_call_operand.hbm [shape: f32[16,16], index: 2, kind: input, shape index: {}]
  %s3 = inlined_call_operand.hbm [shape: f32[16,128], index: 3, kind: input, shape index: {}]
  %s4 = inlined_call_operand.vmem [shape: f32[2,4,1], index: 4, kind: output, shape index: {}]
  %s5 = sld [smem:[#allocation0]]
  $region65: #{tpu_custom_call.1} parent=0
    _
  %s7 = ssub.s32 1, %s5
  %s8 = scalar_select 0, %s7, %s5
  $region1: #{tpu_custom_call.1} parent=0
    #allocation2 [shape = 'u8[65536]{0}', space=vmem, size = 0x10000, scoped, tag = 'input window, operand 0']
    #allocation3 [shape = 's32[2]{0}', space=sflag, size = 0x8, scoped, tag = 'scoped memory for tpu_custom_call.1']
    #allocation4 [shape = 'u8[65536]{0}', space=vmem, size = 0x10000, scoped, tag = 'input window, operand 1']
    #allocation5 [shape = 's32[2]{0}', space=sflag, size = 0x8, scoped, tag = 'scoped memory for tpu_custom_call.1']
    #allocation6 [shape = 'u8[8192]{0}', space=vmem, size = 0x2000, scoped, tag = 'input window, operand 2, single buffered']
    #allocation7 [shape = 'u8[8192]{0}', space=vmem, size = 0x2000, scoped, tag = 'input window, operand 3, single buffered']
    #allocation8 [shape = 's32[1]{0}', space=sflag, size = 0x4, scoped, tag = 'scoped memory for tpu_custom_call.1']
    %9 = vsyncpa [#allocation3], 0
    %s10 = scalar_lea.sflag [#allocation3], 1
    %11 = vsyncpa %s10, 0
    %12 = vsyncpa [#allocation5], 0
    %s13 = scalar_lea.sflag [#allocation5], 1
    %14 = vsyncpa %s13, 0
    %15 = vsyncpa [#allocation8], 0
    loop: start=0, step=1, limit=4
    $region2: #{tpu_custom_call.1} parent=1 // loop_pre_header
      _
    $region3: #{tpu_custom_call.1} parent=1 // loop_header
      %s17 = sphi 0, %s21
      %p18 = scmp.ge.s32.totalorder %s17, 4
      %s27 = sphi 0, %s29
      %s30 = sphi 0, %s27
      %s31 = sphi 0, %s30
      %s47 = sphi 0, %s31
      %s53 = sphi 0, %s55
      %s56 = sphi 0, %s53
      %s57 = sphi 0, %s56
      %s73 = sphi 0, %s57
      %s77 = sphi 0, %s77
      %s79 = sphi 0, %s77
      %s80 = sphi 0, %s79
      %s94 = sphi 0, %s80
      %s98 = sphi 0, %s98
      %s100 = sphi 0, %s98
      %s101 = sphi 0, %s100
      %s115 = sphi 0, %s101
      %s121 = sphi 0, %s123
      %s124 = sphi 0, %s121
      %s125 = sphi 0, %s124
      %s141 = sphi 0, %s125
    $region4: #{tpu_custom_call.1} parent=1 // loop_header_branch
      %20 = sbr.rel (%p18) target = $region8
    $region5: #{tpu_custom_call.1} parent=1 // loop_body
      %s22 = ssub.s32 %s17, 1
      %s23 = ssub.s32 %s17, 2
      %s24 = sadd.s32 %s17, 1
      %s25 = ssub.s32 %s17, %s24
      %p26 = scmp.eq.s32.totalorder %s25, 0
      %s28 = sadd.s32 %s27, 1
      %s29 = scalar_select %p26, %s27, %s28
      %p32 = pneg %p26
      %p33 = scmp.eq.s32.totalorder %s17, 1
      %p34 = por %p32, %p33
      %p35 = scmp.ne.s32.totalorder %s27, %s30
      %p36 = scmp.eq.s32.totalorder %s17, 0
      %p37 = por %p35, %p36
      %p38 = scmp.ne.s32.totalorder %s27, %s30
      %p39 = scmp.eq.s32.totalorder %s22, 1
      %p40 = por %p38, %p39
      %p41 = scmp.ne.s32.totalorder %s30, %s31
      %p42 = scmp.eq.s32.totalorder %s22, 0
      %p43 = por %p41, %p42
      %p44 = scmp.ne.s32.totalorder %s30, %s31
      %p45 = scmp.eq.s32.totalorder %s23, 1
      %p46 = por %p44, %p45
      %p48 = scmp.ne.s32.totalorder %s31, %s47
      %p49 = scmp.eq.s32.totalorder %s23, 0
      %p50 = por %p48, %p49
      %s51 = ssub.s32 %s17, %s24
      %p52 = scmp.eq.s32.totalorder %s51, 0
      %s54 = sadd.s32 %s53, 1
      %s55 = scalar_select %p52, %s53, %s54
      %p58 = pneg %p52
      %p59 = scmp.eq.s32.totalorder %s17, 1
      %p60 = por %p58, %p59
      %p61 = scmp.ne.s32.totalorder %s53, %s56
      %p62 = scmp.eq.s32.totalorder %s17, 0
      %p63 = por %p61, %p62
      %p64 = scmp.ne.s32.totalorder %s53, %s56
      %p65 = scmp.eq.s32.totalorder %s22, 1
      %p66 = por %p64, %p65
      %p67 = scmp.ne.s32.totalorder %s56, %s57
      %p68 = scmp.eq.s32.totalorder %s22, 0
      %p69 = por %p67, %p68
      %p70 = scmp.ne.s32.totalorder %s56, %s57
      %p71 = scmp.eq.s32.totalorder %s23, 1
      %p72 = por %p70, %p71
      %p74 = scmp.ne.s32.totalorder %s57, %s73
      %p75 = scmp.eq.s32.totalorder %s23, 0
      %p76 = por %p74, %p75
      %s78 = sadd.s32 %s77, 1
      %p81 = scmp.eq.s32.totalorder %s17, 1
      %p82 = scmp.ne.s32.totalorder %s77, %s79
      %p83 = scmp.eq.s32.totalorder %s17, 0
      %p84 = por %p82, %p83
      %p85 = scmp.ne.s32.totalorder %s77, %s79
      %p86 = scmp.eq.s32.totalorder %s22, 1
      %p87 = por %p85, %p86
      %p88 = scmp.ne.s32.totalorder %s79, %s80
      %p89 = scmp.eq.s32.totalorder %s22, 0
      %p90 = por %p88, %p89
      %p91 = scmp.ne.s32.totalorder %s79, %s80
      %p92 = scmp.eq.s32.totalorder %s23, 1
      %p93 = por %p91, %p92
      %p95 = scmp.ne.s32.totalorder %s80, %s94
      %p96 = scmp.eq.s32.totalorder %s23, 0
      %p97 = por %p95, %p96
      %s99 = sadd.s32 %s98, 1
      %p102 = scmp.eq.s32.totalorder %s17, 1
      %p103 = scmp.ne.s32.totalorder %s98, %s100
      %p104 = scmp.eq.s32.totalorder %s17, 0
      %p105 = por %p103, %p104
      %p106 = scmp.ne.s32.totalorder %s98, %s100
      %p107 = scmp.eq.s32.totalorder %s22, 1
      %p108 = por %p106, %p107
      %p109 = scmp.ne.s32.totalorder %s100, %s101
      %p110 = scmp.eq.s32.totalorder %s22, 0
      %p111 = por %p109, %p110
      %p112 = scmp.ne.s32.totalorder %s100, %s101
      %p113 = scmp.eq.s32.totalorder %s23, 1
      %p114 = por %p112, %p113
      %p116 = scmp.ne.s32.totalorder %s101, %s115
      %p117 = scmp.eq.s32.totalorder %s23, 0
      %p118 = por %p116, %p117
      %s119 = ssub.s32 %s17, %s24
      %p120 = scmp.eq.s32.totalorder %s119, 0
      %s122 = sadd.s32 %s121, 1
      %s123 = scalar_select %p120, %s121, %s122
      %p126 = pneg %p120
      %p127 = scmp.eq.s32.totalorder %s17, 1
      %p128 = por %p126, %p127
      %p129 = scmp.ne.s32.totalorder %s121, %s124
      %p130 = scmp.eq.s32.totalorder %s17, 0
      %p131 = por %p129, %p130
      %p132 = scmp.ne.s32.totalorder %s121, %s124
      %p133 = scmp.eq.s32.totalorder %s22, 1
      %p134 = por %p132, %p133
      %p135 = scmp.ne.s32.totalorder %s124, %s125
      %p136 = scmp.eq.s32.totalorder %s22, 0
      %p137 = por %p135, %p136
      %p138 = scmp.ne.s32.totalorder %s124, %s125
      %p139 = scmp.eq.s32.totalorder %s23, 1
      %p140 = por %p138, %p139
      %p142 = scmp.ne.s32.totalorder %s125, %s141
      %p143 = scmp.eq.s32.totalorder %s23, 0
      %p144 = por %p142, %p143
      %p145 = scmp.le.s32.totalorder 1, %s17
      %p146 = scmp.lt.s32.totalorder %s17, 3
      %p147 = pnand %p145, %p146
      %p148 = pneg %p147
      // Predicated region
      $region9: #{tpu_custom_call.1} parent=5 // pred_check
        _
      $region10: #{tpu_custom_call.1} parent=5 // pred_check_branch
        %150 = sbr.rel (%p147) target = $region12
      $region11: #{tpu_custom_call.1} parent=5 // pred_region
        %s151 = ssub.s32 %s17, 1
        // Predicated region
        $region13: #{tpu_custom_call.1} parent=11 // pred_check
          %p152 = pneg %p90
        $region14: #{tpu_custom_call.1} parent=11 // pred_check_branch
          %154 = sbr.rel (%p152) target = $region16
        $region15: #{tpu_custom_call.1} parent=11 // pred_region
          %s156 = ssub.s32 256, 256
          %157 = vsyncadd [#allocation5], %s156
          %s158 = sshll.u32 [#allocation6], 4
          %s159 = int_to_ptr.vmem [resolvable:$true] %s158
          %164 = dma.hbm_to_vmem [thread:$0]  %s2, 256, %s159, [#allocation5], 128, 128, 8
        $region16: #{tpu_custom_call.1} parent=11 // pred_fallthru
          _
        // Predicated region
        $region17: #{tpu_custom_call.1} parent=11 // pred_check
          %p165 = pneg %p111
        $region18: #{tpu_custom_call.1} parent=11 // pred_check_branch
          %167 = sbr.rel (%p165) target = $region20
        $region19: #{tpu_custom_call.1} parent=11 // pred_region
          %s169 = ssub.s32 256, 256
          %170 = vsyncadd [#allocation8], %s169
          %s171 = sshll.u32 [#allocation7], 4
          %s172 = int_to_ptr.vmem [resolvable:$true] %s171
          %177 = dma.hbm_to_vmem [thread:$0]  %s3, 256, %s172, [#allocation8], 128, 128, 8
        $region20: #{tpu_custom_call.1} parent=11 // pred_fallthru
          _
      $region12: #{tpu_custom_call.1} parent=5 // pred_fallthru
        _
      %p178 = scmp.lt.s32.totalorder %s17, 2
      // Predicated region
      $region21: #{tpu_custom_call.1} parent=5 // pred_check
        %p179 = pneg %p178
      $region22: #{tpu_custom_call.1} parent=5 // pred_check_branch
        %181 = sbr.rel (%p179) target = $region24
      $region23: #{tpu_custom_call.1} parent=5 // pred_region
        // Predicated region
        $region25: #{tpu_custom_call.1} parent=23 // pred_check
          %p182 = pneg %p37
        $region26: #{tpu_custom_call.1} parent=23 // pred_check_branch
          %184 = sbr.rel (%p182) target = $region28
        $region27: #{tpu_custom_call.1} parent=23 // pred_region
          %s185 = sand.u32 %s27, 1
          %s186 = scalar_lea.sflag [#allocation3], %s185
          %s187 = sand.u32 %s27, 1
          %s188 = smul.addr %s187, 64
          %s189 = scalar_lea.vmem [#allocation2], %s188
          %s190 = smul.u32 4, %s17
          %s192 = ssub.s32 1024, 1024
          %193 = vsyncadd %s186, %s192
          %s194 = smul.addr %s190, 2
          %s195 = smul.addr %s194, 128
          %s196 = scalar_lea.hbm %s0, %s195
          %s197 = sshll.u32 %s189, 4
          %s198 = int_to_ptr.vmem [resolvable:$true] %s197
          %203 = dma.hbm_to_vmem [thread:$0]  %s196, 1024, %s198, %s186, 128, 128, 8
        $region28: #{tpu_custom_call.1} parent=23 // pred_fallthru
          _
        // Predicated region
        $region29: #{tpu_custom_call.1} parent=23 // pred_check
          %p204 = pneg %p63
        $region30: #{tpu_custom_call.1} parent=23 // pred_check_branch
          %206 = sbr.rel (%p204) target = $region32
        $region31: #{tpu_custom_call.1} parent=23 // pred_region
          %s207 = sand.u32 %s17, 1
          %s208 = scalar_lea.sflag [#allocation5], %s207
          %s209 = sand.u32 %s53, 1
          %s210 = smul.addr %s209, 64
          %s211 = scalar_lea.vmem [#allocation4], %s210
          %s212 = smul.u32 4, %s17
          %s214 = ssub.s32 1024, 1024
          %215 = vsyncadd %s208, %s214
          %s216 = smul.addr %s212, 2
          %s217 = smul.addr %s216, 128
          %s218 = scalar_lea.hbm %s1, %s217
          %s219 = sshll.u32 %s211, 4
          %s220 = int_to_ptr.vmem [resolvable:$true] %s219
          %225 = dma.hbm_to_vmem [thread:$0]  %s218, 1024, %s220, %s208, 128, 128, 8
        $region32: #{tpu_custom_call.1} parent=23 // pred_fallthru
          _
      $region24: #{tpu_custom_call.1} parent=5 // pred_fallthru
        _
      %p226 = scmp.le.s32.totalorder 1, %s17
      %p227 = scmp.lt.s32.totalorder %s17, 3
      %p228 = pnand %p226, %p227
      %p229 = pneg %p228
      // Predicated region
      $region33: #{tpu_custom_call.1} parent=5 // pred_check
        _
      $region34: #{tpu_custom_call.1} parent=5 // pred_check_branch
        %231 = sbr.rel (%p228) target = $region36
      $region35: #{tpu_custom_call.1} parent=5 // pred_region
        %s232 = ssub.s32 %s17, 1
        %s233 = sand.u32 %s30, 1
        %s234 = scalar_lea.sflag [#allocation3], %s233
        %s235 = sand.u32 %s30, 1
        %s236 = smul.addr %s235, 64
        %s237 = scalar_lea.vmem [#allocation2], %s236
        // Predicated region
        $region37: #{tpu_custom_call.1} parent=35 // pred_check
          %p238 = pneg %p43
        $region38: #{tpu_custom_call.1} parent=35 // pred_check_branch
          %240 = sbr.rel (%p238) target = $region40
        $region39: #{tpu_custom_call.1} parent=35 // pred_region
          %241 = dma.done %s234, 1024
        $region40: #{tpu_custom_call.1} parent=35 // pred_fallthru
          _
        %s242 = sand.u32 %s22, 1
        %s243 = scalar_lea.sflag [#allocation5], %s242
        %s244 = sand.u32 %s56, 1
        %s245 = smul.addr %s244, 64
        %s246 = scalar_lea.vmem [#allocation4], %s245
        // Predicated region
        $region41: #{tpu_custom_call.1} parent=35 // pred_check
          %p247 = pneg %p69
        $region42: #{tpu_custom_call.1} parent=35 // pred_check_branch
          %249 = sbr.rel (%p247) target = $region44
        $region43: #{tpu_custom_call.1} parent=35 // pred_region
          %250 = dma.done %s243, 1024
        $region44: #{tpu_custom_call.1} parent=35 // pred_fallthru
          _
        // Predicated region
        $region45: #{tpu_custom_call.1} parent=35 // pred_check
          %p251 = pneg %p90
        $region46: #{tpu_custom_call.1} parent=35 // pred_check_branch
          %253 = sbr.rel (%p251) target = $region48
        $region47: #{tpu_custom_call.1} parent=35 // pred_region
          %254 = dma.done [#allocation5], 256
        $region48: #{tpu_custom_call.1} parent=35 // pred_fallthru
          _
        // Predicated region
        $region49: #{tpu_custom_call.1} parent=35 // pred_check
          %p255 = pneg %p111
        $region50: #{tpu_custom_call.1} parent=35 // pred_check_branch
          %257 = sbr.rel (%p255) target = $region52
        $region51: #{tpu_custom_call.1} parent=35 // pred_region
          %258 = dma.done [#allocation8], 256
        $region52: #{tpu_custom_call.1} parent=35 // pred_fallthru
          _
        %s259 = sand.u32 %s30, 1
        %s260 = scalar_lea.sflag [#allocation3], %s259
        %s261 = sand.u32 %s30, 1
        %s262 = smul.addr %s261, 64
        %s263 = scalar_lea.vmem [#allocation2], %s262
        %p264 = pneg %p43
        %p265 = pneg %p40
        %s266 = sand.u32 %s22, 1
        %s267 = scalar_lea.sflag [#allocation5], %s266
        %s268 = sand.u32 %s56, 1
        %s269 = smul.addr %s268, 64
        %s270 = scalar_lea.vmem [#allocation4], %s269
        %p271 = pneg %p69
        %p272 = pneg %p66
        %p273 = pneg %p90
        %p274 = pneg %p87
        %p275 = pneg %p111
        %p276 = pneg %p108
        %p277 = pneg %p137
        %p278 = pneg %p134
        %p279 = scmp.lt.s32.totalorder %s22, 1
        %s280 = scalar_select %p279, %s22, 1
        %s281 = smul.addr %s280, 4
        %s282 = scalar_lea.vmem %s4, %s281
        %s283 = smul.u32 4, %s22
        %s284 = smul.u32 4, %s22
        %p285 = scmp.lt.s32.totalorder %s22, 1
        %s286 = scalar_select %p285, %s22, 1
        %s287 = smul.addr %s286, 4
        %s288 = scalar_lea.vmem %s4, %s287
        %v289 = vld [vmem:[%s237] sm:$0xff]
        %v290 = vld [vmem:[%s237 + $0x8] sm:$0xff]
        %v291 = vld [vmem:[%s237 + $0x10] sm:$0xff]
        %v292 = vld [vmem:[%s237 + $0x18] sm:$0xff]
        %v293 = vld [vmem:[%s237 + $0x20] sm:$0xff]
        %v294 = vld [vmem:[%s237 + $0x28] sm:$0xff]
        %v295 = vld [vmem:[%s237 + $0x30] sm:$0xff]
        %v296 = vld [vmem:[%s237 + $0x38] sm:$0xff]
        %v297 = vld [vmem:[%s246] sm:$0xff]
        %v298 = vld [vmem:[%s246 + $0x8] sm:$0xff]
        %v299 = vld [vmem:[%s246 + $0x10] sm:$0xff]
        %v300 = vld [vmem:[%s246 + $0x18] sm:$0xff]
        %v301 = vld [vmem:[%s246 + $0x20] sm:$0xff]
        %v302 = vld [vmem:[%s246 + $0x28] sm:$0xff]
        %v303 = vld [vmem:[%s246 + $0x30] sm:$0xff]
        %v304 = vld [vmem:[%s246 + $0x38] sm:$0xff]
        %v305 = vld [vmem:[#allocation6] sm:$0xff]
        %v306 = vld [vmem:[#allocation6 + $0x8] sm:$0xff]
        %v307 = vld [vmem:[#allocation7] sm:$0xff]
        %v308 = vld [vmem:[#allocation7 + $0x8] sm:$0xff]
        %vm309 = vcmask 130048
        %v311 = vsel %vm309, %v305, 0
        %v314 = vsel %vm309, %v306, 0
        %316 = vmatprep.subr.mxu0 0.0
        %317 = vmatpush1.msra.mxu0 0.0
        %318 = vmatprep.subr.mxu0 0.0
        %319 = vmatpush1.msra.mxu0 0.0
        %320 = vmatprep.subr.mxu0 0.0
        %321 = vmatpush1.msra.mxu0 0.0
        %322 = vmatprep.subr.mxu0 0.0
        %323 = vmatpush1.msra.mxu0 0.0
        %324 = vmatprep.subr.mxu0 0.0
        %325 = vmatpush1.msra.mxu0 0.0
        %326 = vmatprep.subr.mxu0 0.0
        %327 = vmatpush1.msra.mxu0 0.0
        %328 = vmatprep.subr.mxu0 0.0
        %329 = vmatpush1.msra.mxu0 0.0
        %330 = vmatprep.subr.mxu0 0.0
        %331 = vmatpush1.msra.mxu0 0.0
        %332 = vmatprep.subr.mxu0 0.0
        %333 = vmatpush1.msra.mxu0 0.0
        %334 = vmatprep.subr.mxu0 0.0
        %335 = vmatpush1.msra.mxu0 0.0
        %336 = vmatprep.subr.mxu0 0.0
        %337 = vmatpush1.msra.mxu0 0.0
        %338 = vmatprep.subr.mxu0 0.0
        %339 = vmatpush1.msra.mxu0 0.0
        %340 = vmatprep.subr.mxu0 0.0
        %341 = vmatpush1.msra.mxu0 0.0
        %342 = vmatprep.subr.mxu0 0.0
        %343 = vmatpush1.msra.mxu0 0.0
        %344 = vmatprep.subr.mxu0 0.0
        %345 = vmatpush1.msra.mxu0 %v290
        %346 = vmatprep.subr.mxu0 0.0
        %347 = vmatpush1.msra.mxu0 %v289
        %348 = vmatprep.subr.mxu0 0.0
        %349 = vmatpush2.msra.mxu0 0.0
        %350 = vmatprep.subr.mxu0 0.0
        %351 = vmatpush2.msra.mxu0 0.0
        %352 = vmatprep.subr.mxu0 0.0
        %353 = vmatpush2.msra.mxu0 0.0
        %354 = vmatprep.subr.mxu0 0.0
        %355 = vmatpush2.msra.mxu0 0.0
        %356 = vmatprep.subr.mxu0 0.0
        %357 = vmatpush2.msra.mxu0 0.0
        %358 = vmatprep.subr.mxu0 0.0
        %359 = vmatpush2.msra.mxu0 0.0
        %360 = vmatprep.subr.mxu0 0.0
        %361 = vmatpush2.msra.mxu0 0.0
        %362 = vmatprep.subr.mxu0 0.0
        %363 = vmatpush2.msra.mxu0 0.0
        %364 = vmatprep.subr.mxu0 0.0
        %365 = vmatpush2.msra.mxu0 0.0
        %366 = vmatprep.subr.mxu0 0.0
        %367 = vmatpush2.msra.mxu0 0.0
        %368 = vmatprep.subr.mxu0 0.0
        %369 = vmatpush2.msra.mxu0 0.0
        %370 = vmatprep.subr.mxu0 0.0
        %371 = vmatpush2.msra.mxu0 0.0
        %372 = vmatprep.subr.mxu0 0.0
        %373 = vmatpush2.msra.mxu0 0.0
        %374 = vmatprep.subr.mxu0 0.0
        %375 = vmatpush2.msra.mxu0 0.0
        %376 = vmatprep.subr.mxu0 0.0
        %377 = vmatpush2.msra.mxu0 0.0
        %378 = vmatprep.subr.mxu0 0.0
        %379 = vmatpush2.msra.mxu0 0.0
        %380 = vmatprep.mubr.f32.mxu0 0.0
        %381 = vmatmul.mubr.f32.gmra.mxu0 %v311
        %v382 = vpop.f32.mrf.mxu0
        %v383 = vadd.f32 0.0, %v382
        %v384 = vpop.f32.mrf.mxu0
        %385 = vmatprep.mubr.f32.mxu0 0.0
        %386 = vmatmul.mubr.f32.gmra.mxu0 %v314
        %v387 = vpop.f32.mrf.mxu0
        %v388 = vadd.f32 0.0, %v387
        %v389 = vpop.f32.mrf.mxu0
        %390 = vdwg.mxu0
        %391 = vmatprep.subr.mxu0 0.0
        %392 = vmatpush1.msra.mxu0 0.0
        %393 = vmatprep.subr.mxu0 0.0
        %394 = vmatpush1.msra.mxu0 0.0
        %395 = vmatprep.subr.mxu0 0.0
        %396 = vmatpush1.msra.mxu0 0.0
        %397 = vmatprep.subr.mxu0 0.0
        %398 = vmatpush1.msra.mxu0 0.0
        %399 = vmatprep.subr.mxu0 0.0
        %400 = vmatpush1.msra.mxu0 0.0
        %401 = vmatprep.subr.mxu0 0.0
        %402 = vmatpush1.msra.mxu0 0.0
        %403 = vmatprep.subr.mxu0 0.0
        %404 = vmatpush1.msra.mxu0 0.0
        %405 = vmatprep.subr.mxu0 0.0
        %406 = vmatpush1.msra.mxu0 0.0
        %407 = vmatprep.subr.mxu0 0.0
        %408 = vmatpush1.msra.mxu0 0.0
        %409 = vmatprep.subr.mxu0 0.0
        %410 = vmatpush1.msra.mxu0 0.0
        %411 = vmatprep.subr.mxu0 0.0
        %412 = vmatpush1.msra.mxu0 0.0
        %413 = vmatprep.subr.mxu0 0.0
        %414 = vmatpush1.msra.mxu0 0.0
        %415 = vmatprep.subr.mxu0 0.0
        %416 = vmatpush1.msra.mxu0 0.0
        %417 = vmatprep.subr.mxu0 0.0
        %418 = vmatpush1.msra.mxu0 0.0
        %419 = vmatprep.subr.mxu0 0.0
        %420 = vmatpush1.msra.mxu0 %v292
        %421 = vmatprep.subr.mxu0 0.0
        %422 = vmatpush1.msra.mxu0 %v291
        %423 = vmatprep.subr.mxu0 0.0
        %424 = vmatpush2.msra.mxu0 0.0
        %425 = vmatprep.subr.mxu0 0.0
        %426 = vmatpush2.msra.mxu0 0.0
        %427 = vmatprep.subr.mxu0 0.0
        %428 = vmatpush2.msra.mxu0 0.0
        %429 = vmatprep.subr.mxu0 0.0
        %430 = vmatpush2.msra.mxu0 0.0
        %431 = vmatprep.subr.mxu0 0.0
        %432 = vmatpush2.msra.mxu0 0.0
        %433 = vmatprep.subr.mxu0 0.0
        %434 = vmatpush2.msra.mxu0 0.0
        %435 = vmatprep.subr.mxu0 0.0
        %436 = vmatpush2.msra.mxu0 0.0
        %437 = vmatprep.subr.mxu0 0.0
        %438 = vmatpush2.msra.mxu0 0.0
        %439 = vmatprep.subr.mxu0 0.0
        %440 = vmatpush2.msra.mxu0 0.0
        %441 = vmatprep.subr.mxu0 0.0
        %442 = vmatpush2.msra.mxu0 0.0
        %443 = vmatprep.subr.mxu0 0.0
        %444 = vmatpush2.msra.mxu0 0.0
        %445 = vmatprep.subr.mxu0 0.0
        %446 = vmatpush2.msra.mxu0 0.0
        %447 = vmatprep.subr.mxu0 0.0
        %448 = vmatpush2.msra.mxu0 0.0
        %449 = vmatprep.subr.mxu0 0.0
        %450 = vmatpush2.msra.mxu0 0.0
        %451 = vmatprep.subr.mxu0 0.0
        %452 = vmatpush2.msra.mxu0 0.0
        %453 = vmatprep.subr.mxu0 0.0
        %454 = vmatpush2.msra.mxu0 0.0
        %455 = vmatprep.mubr.f32.mxu0 0.0
        %456 = vmatmul.mubr.f32.gmra.mxu0 %v311
        %v457 = vpop.f32.mrf.mxu0
        %v458 = vadd.f32 0.0, %v457
        %v459 = vpop.f32.mrf.mxu0
        %460 = vmatprep.mubr.f32.mxu0 0.0
        %461 = vmatmul.mubr.f32.gmra.mxu0 %v314
        %v462 = vpop.f32.mrf.mxu0
        %v463 = vadd.f32 0.0, %v462
        %v464 = vpop.f32.mrf.mxu0
        %465 = vdwg.mxu0
        %466 = vmatprep.subr.mxu0 0.0
        %467 = vmatpush1.msra.mxu0 0.0
        %468 = vmatprep.subr.mxu0 0.0
        %469 = vmatpush1.msra.mxu0 0.0
        %470 = vmatprep.subr.mxu0 0.0
        %471 = vmatpush1.msra.mxu0 0.0
        %472 = vmatprep.subr.mxu0 0.0
        %473 = vmatpush1.msra.mxu0 0.0
        %474 = vmatprep.subr.mxu0 0.0
        %475 = vmatpush1.msra.mxu0 0.0
        %476 = vmatprep.subr.mxu0 0.0
        %477 = vmatpush1.msra.mxu0 0.0
        %478 = vmatprep.subr.mxu0 0.0
        %479 = vmatpush1.msra.mxu0 0.0
        %480 = vmatprep.subr.mxu0 0.0
        %481 = vmatpush1.msra.mxu0 0.0
        %482 = vmatprep.subr.mxu0 0.0
        %483 = vmatpush1.msra.mxu0 0.0
        %484 = vmatprep.subr.mxu0 0.0
        %485 = vmatpush1.msra.mxu0 0.0
        %486 = vmatprep.subr.mxu0 0.0
        %487 = vmatpush1.msra.mxu0 0.0
        %488 = vmatprep.subr.mxu0 0.0
        %489 = vmatpush1.msra.mxu0 0.0
        %490 = vmatprep.subr.mxu0 0.0
        %491 = vmatpush1.msra.mxu0 0.0
        %492 = vmatprep.subr.mxu0 0.0
        %493 = vmatpush1.msra.mxu0 0.0
        %494 = vmatprep.subr.mxu0 0.0
        %495 = vmatpush1.msra.mxu0 %v294
        %496 = vmatprep.subr.mxu0 0.0
        %497 = vmatpush1.msra.mxu0 %v293
        %498 = vmatprep.subr.mxu0 0.0
        %499 = vmatpush2.msra.mxu0 0.0
        %500 = vmatprep.subr.mxu0 0.0
        %501 = vmatpush2.msra.mxu0 0.0
        %502 = vmatprep.subr.mxu0 0.0
        %503 = vmatpush2.msra.mxu0 0.0
        %504 = vmatprep.subr.mxu0 0.0
        %505 = vmatpush2.msra.mxu0 0.0
        %506 = vmatprep.subr.mxu0 0.0
        %507 = vmatpush2.msra.mxu0 0.0
        %508 = vmatprep.subr.mxu0 0.0
        %509 = vmatpush2.msra.mxu0 0.0
        %510 = vmatprep.subr.mxu0 0.0
        %511 = vmatpush2.msra.mxu0 0.0
        %512 = vmatprep.subr.mxu0 0.0
        %513 = vmatpush2.msra.mxu0 0.0
        %514 = vmatprep.subr.mxu0 0.0
        %515 = vmatpush2.msra.mxu0 0.0
        %516 = vmatprep.subr.mxu0 0.0
        %517 = vmatpush2.msra.mxu0 0.0
        %518 = vmatprep.subr.mxu0 0.0
        %519 = vmatpush2.msra.mxu0 0.0
        %520 = vmatprep.subr.mxu0 0.0
        %521 = vmatpush2.msra.mxu0 0.0
        %522 = vmatprep.subr.mxu0 0.0
        %523 = vmatpush2.msra.mxu0 0.0
        %524 = vmatprep.subr.mxu0 0.0
        %525 = vmatpush2.msra.mxu0 0.0
        %526 = vmatprep.subr.mxu0 0.0
        %527 = vmatpush2.msra.mxu0 0.0
        %528 = vmatprep.subr.mxu0 0.0
        %529 = vmatpush2.msra.mxu0 0.0
        %530 = vmatprep.mubr.f32.mxu0 0.0
        %531 = vmatmul.mubr.f32.gmra.mxu0 %v311
        %v532 = vpop.f32.mrf.mxu0
        %v533 = vadd.f32 0.0, %v532
        %v534 = vpop.f32.mrf.mxu0
        %535 = vmatprep.mubr.f32.mxu0 0.0
        %536 = vmatmul.mubr.f32.gmra.mxu0 %v314
        %v537 = vpop.f32.mrf.mxu0
        %v538 = vadd.f32 0.0, %v537
        %v539 = vpop.f32.mrf.mxu0
        %540 = vdwg.mxu0
        %541 = vmatprep.subr.mxu0 0.0
        %542 = vmatpush1.msra.mxu0 0.0
        %543 = vmatprep.subr.mxu0 0.0
        %544 = vmatpush1.msra.mxu0 0.0
        %545 = vmatprep.subr.mxu0 0.0
        %546 = vmatpush1.msra.mxu0 0.0
        %547 = vmatprep.subr.mxu0 0.0
        %548 = vmatpush1.msra.mxu0 0.0
        %549 = vmatprep.subr.mxu0 0.0
        %550 = vmatpush1.msra.mxu0 0.0
        %551 = vmatprep.subr.mxu0 0.0
        %552 = vmatpush1.msra.mxu0 0.0
        %553 = vmatprep.subr.mxu0 0.0
        %554 = vmatpush1.msra.mxu0 0.0
        %555 = vmatprep.subr.mxu0 0.0
        %556 = vmatpush1.msra.mxu0 0.0
        %557 = vmatprep.subr.mxu0 0.0
        %558 = vmatpush1.msra.mxu0 0.0
        %559 = vmatprep.subr.mxu0 0.0
        %560 = vmatpush1.msra.mxu0 0.0
        %561 = vmatprep.subr.mxu0 0.0
        %562 = vmatpush1.msra.mxu0 0.0
        %563 = vmatprep.subr.mxu0 0.0
        %564 = vmatpush1.msra.mxu0 0.0
        %565 = vmatprep.subr.mxu0 0.0
        %566 = vmatpush1.msra.mxu0 0.0
        %567 = vmatprep.subr.mxu0 0.0
        %568 = vmatpush1.msra.mxu0 0.0
        %569 = vmatprep.subr.mxu0 0.0
        %570 = vmatpush1.msra.mxu0 %v296
        %571 = vmatprep.subr.mxu0 0.0
        %572 = vmatpush1.msra.mxu0 %v295
        %573 = vmatprep.subr.mxu0 0.0
        %574 = vmatpush2.msra.mxu0 0.0
        %575 = vmatprep.subr.mxu0 0.0
        %576 = vmatpush2.msra.mxu0 0.0
        %577 = vmatprep.subr.mxu0 0.0
        %578 = vmatpush2.msra.mxu0 0.0
        %579 = vmatprep.subr.mxu0 0.0
        %580 = vmatpush2.msra.mxu0 0.0
        %581 = vmatprep.subr.mxu0 0.0
        %582 = vmatpush2.msra.mxu0 0.0
        %583 = vmatprep.subr.mxu0 0.0
        %584 = vmatpush2.msra.mxu0 0.0
        %585 = vmatprep.subr.mxu0 0.0
        %586 = vmatpush2.msra.mxu0 0.0
        %587 = vmatprep.subr.mxu0 0.0
        %588 = vmatpush2.msra.mxu0 0.0
        %589 = vmatprep.subr.mxu0 0.0
        %590 = vmatpush2.msra.mxu0 0.0
        %591 = vmatprep.subr.mxu0 0.0
        %592 = vmatpush2.msra.mxu0 0.0
        %593 = vmatprep.subr.mxu0 0.0
        %594 = vmatpush2.msra.mxu0 0.0
        %595 = vmatprep.subr.mxu0 0.0
        %596 = vmatpush2.msra.mxu0 0.0
        %597 = vmatprep.subr.mxu0 0.0
        %598 = vmatpush2.msra.mxu0 0.0
        %599 = vmatprep.subr.mxu0 0.0
        %600 = vmatpush2.msra.mxu0 0.0
        %601 = vmatprep.subr.mxu0 0.0
        %602 = vmatpush2.msra.mxu0 0.0
        %603 = vmatprep.subr.mxu0 0.0
        %604 = vmatpush2.msra.mxu0 0.0
        %605 = vmatprep.mubr.f32.mxu0 0.0
        %606 = vmatmul.mubr.f32.gmra.mxu0 %v311
        %v607 = vpop.f32.mrf.mxu0
        %v608 = vadd.f32 0.0, %v607
        %v609 = vpop.f32.mrf.mxu0
        %610 = vmatprep.mubr.f32.mxu0 0.0
        %611 = vmatmul.mubr.f32.gmra.mxu0 %v314
        %v612 = vpop.f32.mrf.mxu0
        %v613 = vadd.f32 0.0, %v612
        %v614 = vpop.f32.mrf.mxu0
        %615 = vdwg.mxu0
        %v617 = vsel %vm309, %v383, 0
        %v620 = vsel %vm309, %v388, 0
        %v623 = vsel %vm309, %v458, 0
        %v626 = vsel %vm309, %v463, 0
        %v629 = vsel %vm309, %v533, 0
        %v632 = vsel %vm309, %v538, 0
        %v635 = vsel %vm309, %v608, 0
        %v638 = vsel %vm309, %v613, 0
        %640 = vmatprep.subr.mxu0 0.0
        %641 = vmatpush1.msra.mxu0 0.0
        %642 = vmatprep.subr.mxu0 0.0
        %643 = vmatpush1.msra.mxu0 0.0
        %644 = vmatprep.subr.mxu0 0.0
        %645 = vmatpush1.msra.mxu0 0.0
        %646 = vmatprep.subr.mxu0 0.0
        %647 = vmatpush1.msra.mxu0 0.0
        %648 = vmatprep.subr.mxu0 0.0
        %649 = vmatpush1.msra.mxu0 0.0
        %650 = vmatprep.subr.mxu0 0.0
        %651 = vmatpush1.msra.mxu0 0.0
        %652 = vmatprep.subr.mxu0 0.0
        %653 = vmatpush1.msra.mxu0 0.0
        %654 = vmatprep.subr.mxu0 0.0
        %655 = vmatpush1.msra.mxu0 0.0
        %656 = vmatprep.subr.mxu0 0.0
        %657 = vmatpush1.msra.mxu0 0.0
        %658 = vmatprep.subr.mxu0 0.0
        %659 = vmatpush1.msra.mxu0 0.0
        %660 = vmatprep.subr.mxu0 0.0
        %661 = vmatpush1.msra.mxu0 0.0
        %662 = vmatprep.subr.mxu0 0.0
        %663 = vmatpush1.msra.mxu0 0.0
        %664 = vmatprep.subr.mxu0 0.0
        %665 = vmatpush1.msra.mxu0 0.0
        %666 = vmatprep.subr.mxu0 0.0
        %667 = vmatpush1.msra.mxu0 0.0
        %668 = vmatprep.subr.mxu0 0.0
        %669 = vmatpush1.msra.mxu0 %v308
        %670 = vmatprep.subr.mxu0 0.0
        %671 = vmatpush1.msra.mxu0 %v307
        %672 = vmatprep.subr.mxu0 0.0
        %673 = vmatpush2.msra.mxu0 0.0
        %674 = vmatprep.subr.mxu0 0.0
        %675 = vmatpush2.msra.mxu0 0.0
        %676 = vmatprep.subr.mxu0 0.0
        %677 = vmatpush2.msra.mxu0 0.0
        %678 = vmatprep.subr.mxu0 0.0
        %679 = vmatpush2.msra.mxu0 0.0
        %680 = vmatprep.subr.mxu0 0.0
        %681 = vmatpush2.msra.mxu0 0.0
        %682 = vmatprep.subr.mxu0 0.0
        %683 = vmatpush2.msra.mxu0 0.0
        %684 = vmatprep.subr.mxu0 0.0
        %685 = vmatpush2.msra.mxu0 0.0
        %686 = vmatprep.subr.mxu0 0.0
        %687 = vmatpush2.msra.mxu0 0.0
        %688 = vmatprep.subr.mxu0 0.0
        %689 = vmatpush2.msra.mxu0 0.0
        %690 = vmatprep.subr.mxu0 0.0
        %691 = vmatpush2.msra.mxu0 0.0
        %692 = vmatprep.subr.mxu0 0.0
        %693 = vmatpush2.msra.mxu0 0.0
        %694 = vmatprep.subr.mxu0 0.0
        %695 = vmatpush2.msra.mxu0 0.0
        %696 = vmatprep.subr.mxu0 0.0
        %697 = vmatpush2.msra.mxu0 0.0
        %698 = vmatprep.subr.mxu0 0.0
        %699 = vmatpush2.msra.mxu0 0.0
        %700 = vmatprep.subr.mxu0 0.0
        %701 = vmatpush2.msra.mxu0 0.0
        %702 = vmatprep.subr.mxu0 0.0
        %703 = vmatpush2.msra.mxu0 0.0
        %704 = vmatprep.mubr.f32.mxu0 0.0
        %705 = vmatmul.mubr.f32.gmra.mxu0 %v617
        %v706 = vpop.f32.mrf.mxu0
        %v707 = vadd.f32 0.0, %v706
        %v708 = vpop.f32.mrf.mxu0
        %709 = vmatprep.mubr.f32.mxu0 0.0
        %710 = vmatmul.mubr.f32.gmra.mxu0 %v620
        %v711 = vpop.f32.mrf.mxu0
        %v712 = vadd.f32 0.0, %v711
        %v713 = vpop.f32.mrf.mxu0
        %714 = vmatprep.mubr.f32.mxu0 0.0
        %715 = vmatmul.mubr.f32.gmra.mxu0 %v623
        %v716 = vpop.f32.mrf.mxu0
        %v717 = vadd.f32 0.0, %v716
        %v718 = vpop.f32.mrf.mxu0
        %719 = vmatprep.mubr.f32.mxu0 0.0
        %720 = vmatmul.mubr.f32.gmra.mxu0 %v626
        %v721 = vpop.f32.mrf.mxu0
        %v722 = vadd.f32 0.0, %v721
        %v723 = vpop.f32.mrf.mxu0
        %724 = vmatprep.mubr.f32.mxu0 0.0
        %725 = vmatmul.mubr.f32.gmra.mxu0 %v629
        %v726 = vpop.f32.mrf.mxu0
        %v727 = vadd.f32 0.0, %v726
        %v728 = vpop.f32.mrf.mxu0
        %729 = vmatprep.mubr.f32.mxu0 0.0
        %730 = vmatmul.mubr.f32.gmra.mxu0 %v632
        %v731 = vpop.f32.mrf.mxu0
        %v732 = vadd.f32 0.0, %v731
        %v733 = vpop.f32.mrf.mxu0
        %734 = vmatprep.mubr.f32.mxu0 0.0
        %735 = vmatmul.mubr.f32.gmra.mxu0 %v635
        %v736 = vpop.f32.mrf.mxu0
        %v737 = vadd.f32 0.0, %v736
        %v738 = vpop.f32.mrf.mxu0
        %739 = vmatprep.mubr.f32.mxu0 0.0
        %740 = vmatmul.mubr.f32.gmra.mxu0 %v638
        %v741 = vpop.f32.mrf.mxu0
        %v742 = vadd.f32 0.0, %v741
        %v743 = vpop.f32.mrf.mxu0
        %744 = vdwg.mxu0
        %745 = vmatprep.subr.mxu0 0.0
        %746 = vmatpush1.msra.mxu0 0.0
        %747 = vmatprep.subr.mxu0 0.0
        %748 = vmatpush1.msra.mxu0 0.0
        %749 = vmatprep.subr.mxu0 0.0
        %750 = vmatpush1.msra.mxu0 0.0
        %751 = vmatprep.subr.mxu0 0.0
        %752 = vmatpush1.msra.mxu0 0.0
        %753 = vmatprep.subr.mxu0 0.0
        %754 = vmatpush1.msra.mxu0 0.0
        %755 = vmatprep.subr.mxu0 0.0
        %756 = vmatpush1.msra.mxu0 0.0
        %757 = vmatprep.subr.mxu0 0.0
        %758 = vmatpush1.msra.mxu0 0.0
        %759 = vmatprep.subr.mxu0 0.0
        %760 = vmatpush1.msra.mxu0 0.0
        %761 = vmatprep.subr.mxu0 0.0
        %762 = vmatpush1.msra.mxu0 0.0
        %763 = vmatprep.subr.mxu0 0.0
        %764 = vmatpush1.msra.mxu0 0.0
        %765 = vmatprep.subr.mxu0 0.0
        %766 = vmatpush1.msra.mxu0 0.0
        %767 = vmatprep.subr.mxu0 0.0
        %768 = vmatpush1.msra.mxu0 0.0
        %769 = vmatprep.subr.mxu0 0.0
        %770 = vmatpush1.msra.mxu0 0.0
        %771 = vmatprep.subr.mxu0 0.0
        %772 = vmatpush1.msra.mxu0 0.0
        %773 = vmatprep.subr.mxu0 0.0
        %774 = vmatpush1.msra.mxu0 %v298
        %775 = vmatprep.subr.mxu0 0.0
        %776 = vmatpush1.msra.mxu0 %v297
        %777 = vmatprep.subr.mxu0 0.0
        %778 = vmatpush2.msra.mxu0 0.0
        %779 = vmatprep.subr.mxu0 0.0
        %780 = vmatpush2.msra.mxu0 0.0
        %781 = vmatprep.subr.mxu0 0.0
        %782 = vmatpush2.msra.mxu0 0.0
        %783 = vmatprep.subr.mxu0 0.0
        %784 = vmatpush2.msra.mxu0 0.0
        %785 = vmatprep.subr.mxu0 0.0
        %786 = vmatpush2.msra.mxu0 0.0
        %787 = vmatprep.subr.mxu0 0.0
        %788 = vmatpush2.msra.mxu0 0.0
        %789 = vmatprep.subr.mxu0 0.0
        %790 = vmatpush2.msra.mxu0 0.0
        %791 = vmatprep.subr.mxu0 0.0
        %792 = vmatpush2.msra.mxu0 0.0
        %793 = vmatprep.subr.mxu0 0.0
        %794 = vmatpush2.msra.mxu0 0.0
        %795 = vmatprep.subr.mxu0 0.0
        %796 = vmatpush2.msra.mxu0 0.0
        %797 = vmatprep.subr.mxu0 0.0
        %798 = vmatpush2.msra.mxu0 0.0
        %799 = vmatprep.subr.mxu0 0.0
        %800 = vmatpush2.msra.mxu0 0.0
        %801 = vmatprep.subr.mxu0 0.0
        %802 = vmatpush2.msra.mxu0 0.0
        %803 = vmatprep.subr.mxu0 0.0
        %804 = vmatpush2.msra.mxu0 0.0
        %805 = vmatprep.subr.mxu0 0.0
        %806 = vmatpush2.msra.mxu0 0.0
        %807 = vmatprep.subr.mxu0 0.0
        %808 = vmatpush2.msra.mxu0 0.0
        %809 = vmatprep.mubr.f32.mxu0 0.0
        %810 = vmatmul.mubr.f32.gmra.mxu0 %v311
        %v811 = vpop.f32.mrf.mxu0
        %v812 = vadd.f32 0.0, %v811
        %v813 = vpop.f32.mrf.mxu0
        %814 = vmatprep.mubr.f32.mxu0 0.0
        %815 = vmatmul.mubr.f32.gmra.mxu0 %v314
        %v816 = vpop.f32.mrf.mxu0
        %v817 = vadd.f32 0.0, %v816
        %v818 = vpop.f32.mrf.mxu0
        %819 = vdwg.mxu0
        %820 = vmatprep.subr.mxu0 0.0
        %821 = vmatpush1.msra.mxu0 0.0
        %822 = vmatprep.subr.mxu0 0.0
        %823 = vmatpush1.msra.mxu0 0.0
        %824 = vmatprep.subr.mxu0 0.0
        %825 = vmatpush1.msra.mxu0 0.0
        %826 = vmatprep.subr.mxu0 0.0
        %827 = vmatpush1.msra.mxu0 0.0
        %828 = vmatprep.subr.mxu0 0.0
        %829 = vmatpush1.msra.mxu0 0.0
        %830 = vmatprep.subr.mxu0 0.0
        %831 = vmatpush1.msra.mxu0 0.0
        %832 = vmatprep.subr.mxu0 0.0
        %833 = vmatpush1.msra.mxu0 0.0
        %834 = vmatprep.subr.mxu0 0.0
        %835 = vmatpush1.msra.mxu0 0.0
        %836 = vmatprep.subr.mxu0 0.0
        %837 = vmatpush1.msra.mxu0 0.0
        %838 = vmatprep.subr.mxu0 0.0
        %839 = vmatpush1.msra.mxu0 0.0
        %840 = vmatprep.subr.mxu0 0.0
        %841 = vmatpush1.msra.mxu0 0.0
        %842 = vmatprep.subr.mxu0 0.0
        %843 = vmatpush1.msra.mxu0 0.0
        %844 = vmatprep.subr.mxu0 0.0
        %845 = vmatpush1.msra.mxu0 0.0
        %846 = vmatprep.subr.mxu0 0.0
        %847 = vmatpush1.msra.mxu0 0.0
        %848 = vmatprep.subr.mxu0 0.0
        %849 = vmatpush1.msra.mxu0 %v300
        %850 = vmatprep.subr.mxu0 0.0
        %851 = vmatpush1.msra.mxu0 %v299
        %852 = vmatprep.subr.mxu0 0.0
        %853 = vmatpush2.msra.mxu0 0.0
        %854 = vmatprep.subr.mxu0 0.0
        %855 = vmatpush2.msra.mxu0 0.0
        %856 = vmatprep.subr.mxu0 0.0
        %857 = vmatpush2.msra.mxu0 0.0
        %858 = vmatprep.subr.mxu0 0.0
        %859 = vmatpush2.msra.mxu0 0.0
        %860 = vmatprep.subr.mxu0 0.0
        %861 = vmatpush2.msra.mxu0 0.0
        %862 = vmatprep.subr.mxu0 0.0
        %863 = vmatpush2.msra.mxu0 0.0
        %864 = vmatprep.subr.mxu0 0.0
        %865 = vmatpush2.msra.mxu0 0.0
        %866 = vmatprep.subr.mxu0 0.0
        %867 = vmatpush2.msra.mxu0 0.0
        %868 = vmatprep.subr.mxu0 0.0
        %869 = vmatpush2.msra.mxu0 0.0
        %870 = vmatprep.subr.mxu0 0.0
        %871 = vmatpush2.msra.mxu0 0.0
        %872 = vmatprep.subr.mxu0 0.0
        %873 = vmatpush2.msra.mxu0 0.0
        %874 = vmatprep.subr.mxu0 0.0
        %875 = vmatpush2.msra.mxu0 0.0
        %876 = vmatprep.subr.mxu0 0.0
        %877 = vmatpush2.msra.mxu0 0.0
        %878 = vmatprep.subr.mxu0 0.0
        %879 = vmatpush2.msra.mxu0 0.0
        %880 = vmatprep.subr.mxu0 0.0
        %881 = vmatpush2.msra.mxu0 0.0
        %882 = vmatprep.subr.mxu0 0.0
        %883 = vmatpush2.msra.mxu0 0.0
        %884 = vmatprep.mubr.f32.mxu0 0.0
        %885 = vmatmul.mubr.f32.gmra.mxu0 %v311
        %v886 = vpop.f32.mrf.mxu0
        %v887 = vadd.f32 0.0, %v886
        %v888 = vpop.f32.mrf.mxu0
        %889 = vmatprep.mubr.f32.mxu0 0.0
        %890 = vmatmul.mubr.f32.gmra.mxu0 %v314
        %v891 = vpop.f32.mrf.mxu0
        %v892 = vadd.f32 0.0, %v891
        %v893 = vpop.f32.mrf.mxu0
        %894 = vdwg.mxu0
        %895 = vmatprep.subr.mxu0 0.0
        %896 = vmatpush1.msra.mxu0 0.0
        %897 = vmatprep.subr.mxu0 0.0
        %898 = vmatpush1.msra.mxu0 0.0
        %899 = vmatprep.subr.mxu0 0.0
        %900 = vmatpush1.msra.mxu0 0.0
        %901 = vmatprep.subr.mxu0 0.0
        %902 = vmatpush1.msra.mxu0 0.0
        %903 = vmatprep.subr.mxu0 0.0
        %904 = vmatpush1.msra.mxu0 0.0
        %905 = vmatprep.subr.mxu0 0.0
        %906 = vmatpush1.msra.mxu0 0.0
        %907 = vmatprep.subr.mxu0 0.0
        %908 = vmatpush1.msra.mxu0 0.0
        %909 = vmatprep.subr.mxu0 0.0
        %910 = vmatpush1.msra.mxu0 0.0
        %911 = vmatprep.subr.mxu0 0.0
        %912 = vmatpush1.msra.mxu0 0.0
        %913 = vmatprep.subr.mxu0 0.0
        %914 = vmatpush1.msra.mxu0 0.0
        %915 = vmatprep.subr.mxu0 0.0
        %916 = vmatpush1.msra.mxu0 0.0
        %917 = vmatprep.subr.mxu0 0.0
        %918 = vmatpush1.msra.mxu0 0.0
        %919 = vmatprep.subr.mxu0 0.0
        %920 = vmatpush1.msra.mxu0 0.0
        %921 = vmatprep.subr.mxu0 0.0
        %922 = vmatpush1.msra.mxu0 0.0
        %923 = vmatprep.subr.mxu0 0.0
        %924 = vmatpush1.msra.mxu0 %v302
        %925 = vmatprep.subr.mxu0 0.0
        %926 = vmatpush1.msra.mxu0 %v301
        %927 = vmatprep.subr.mxu0 0.0
        %928 = vmatpush2.msra.mxu0 0.0
        %929 = vmatprep.subr.mxu0 0.0
        %930 = vmatpush2.msra.mxu0 0.0
        %931 = vmatprep.subr.mxu0 0.0
        %932 = vmatpush2.msra.mxu0 0.0
        %933 = vmatprep.subr.mxu0 0.0
        %934 = vmatpush2.msra.mxu0 0.0
        %935 = vmatprep.subr.mxu0 0.0
        %936 = vmatpush2.msra.mxu0 0.0
        %937 = vmatprep.subr.mxu0 0.0
        %938 = vmatpush2.msra.mxu0 0.0
        %939 = vmatprep.subr.mxu0 0.0
        %940 = vmatpush2.msra.mxu0 0.0
        %941 = vmatprep.subr.mxu0 0.0
        %942 = vmatpush2.msra.mxu0 0.0
        %943 = vmatprep.subr.mxu0 0.0
        %944 = vmatpush2.msra.mxu0 0.0
        %945 = vmatprep.subr.mxu0 0.0
        %946 = vmatpush2.msra.mxu0 0.0
        %947 = vmatprep.subr.mxu0 0.0
        %948 = vmatpush2.msra.mxu0 0.0
        %949 = vmatprep.subr.mxu0 0.0
        %950 = vmatpush2.msra.mxu0 0.0
        %951 = vmatprep.subr.mxu0 0.0
        %952 = vmatpush2.msra.mxu0 0.0
        %953 = vmatprep.subr.mxu0 0.0
        %954 = vmatpush2.msra.mxu0 0.0
        %955 = vmatprep.subr.mxu0 0.0
        %956 = vmatpush2.msra.mxu0 0.0
        %957 = vmatprep.subr.mxu0 0.0
        %958 = vmatpush2.msra.mxu0 0.0
        %959 = vmatprep.mubr.f32.mxu0 0.0
        %960 = vmatmul.mubr.f32.gmra.mxu0 %v311
        %v961 = vpop.f32.mrf.mxu0
        %v962 = vadd.f32 0.0, %v961
        %v963 = vpop.f32.mrf.mxu0
        %964 = vmatprep.mubr.f32.mxu0 0.0
        %965 = vmatmul.mubr.f32.gmra.mxu0 %v314
        %v966 = vpop.f32.mrf.mxu0
        %v967 = vadd.f32 0.0, %v966
        %v968 = vpop.f32.mrf.mxu0
        %969 = vdwg.mxu0
        %970 = vmatprep.subr.mxu0 0.0
        %971 = vmatpush1.msra.mxu0 0.0
        %972 = vmatprep.subr.mxu0 0.0
        %973 = vmatpush1.msra.mxu0 0.0
        %974 = vmatprep.subr.mxu0 0.0
        %975 = vmatpush1.msra.mxu0 0.0
        %976 = vmatprep.subr.mxu0 0.0
        %977 = vmatpush1.msra.mxu0 0.0
        %978 = vmatprep.subr.mxu0 0.0
        %979 = vmatpush1.msra.mxu0 0.0
        %980 = vmatprep.subr.mxu0 0.0
        %981 = vmatpush1.msra.mxu0 0.0
        %982 = vmatprep.subr.mxu0 0.0
        %983 = vmatpush1.msra.mxu0 0.0
        %984 = vmatprep.subr.mxu0 0.0
        %985 = vmatpush1.msra.mxu0 0.0
        %986 = vmatprep.subr.mxu0 0.0
        %987 = vmatpush1.msra.mxu0 0.0
        %988 = vmatprep.subr.mxu0 0.0
        %989 = vmatpush1.msra.mxu0 0.0
        %990 = vmatprep.subr.mxu0 0.0
        %991 = vmatpush1.msra.mxu0 0.0
        %992 = vmatprep.subr.mxu0 0.0
        %993 = vmatpush1.msra.mxu0 0.0
        %994 = vmatprep.subr.mxu0 0.0
        %995 = vmatpush1.msra.mxu0 0.0
        %996 = vmatprep.subr.mxu0 0.0
        %997 = vmatpush1.msra.mxu0 0.0
        %998 = vmatprep.subr.mxu0 0.0
        %999 = vmatpush1.msra.mxu0 %v304
        %1000 = vmatprep.subr.mxu0 0.0
        %1001 = vmatpush1.msra.mxu0 %v303
        %1002 = vmatprep.subr.mxu0 0.0
        %1003 = vmatpush2.msra.mxu0 0.0
        %1004 = vmatprep.subr.mxu0 0.0
        %1005 = vmatpush2.msra.mxu0 0.0
        %1006 = vmatprep.subr.mxu0 0.0
        %1007 = vmatpush2.msra.mxu0 0.0
        %1008 = vmatprep.subr.mxu0 0.0
        %1009 = vmatpush2.msra.mxu0 0.0
        %1010 = vmatprep.subr.mxu0 0.0
        %1011 = vmatpush2.msra.mxu0 0.0
        %1012 = vmatprep.subr.mxu0 0.0
        %1013 = vmatpush2.msra.mxu0 0.0
        %1014 = vmatprep.subr.mxu0 0.0
        %1015 = vmatpush2.msra.mxu0 0.0
        %1016 = vmatprep.subr.mxu0 0.0
        %1017 = vmatpush2.msra.mxu0 0.0
        %1018 = vmatprep.subr.mxu0 0.0
        %1019 = vmatpush2.msra.mxu0 0.0
        %1020 = vmatprep.subr.mxu0 0.0
        %1021 = vmatpush2.msra.mxu0 0.0
        %1022 = vmatprep.subr.mxu0 0.0
        %1023 = vmatpush2.msra.mxu0 0.0
        %1024 = vmatprep.subr.mxu0 0.0
        %1025 = vmatpush2.msra.mxu0 0.0
        %1026 = vmatprep.subr.mxu0 0.0
        %1027 = vmatpush2.msra.mxu0 0.0
        %1028 = vmatprep.subr.mxu0 0.0
        %1029 = vmatpush2.msra.mxu0 0.0
        %1030 = vmatprep.subr.mxu0 0.0
        %1031 = vmatpush2.msra.mxu0 0.0
        %1032 = vmatprep.subr.mxu0 0.0
        %1033 = vmatpush2.msra.mxu0 0.0
        %1034 = vmatprep.mubr.f32.mxu0 0.0
        %1035 = vmatmul.mubr.f32.gmra.mxu0 %v311
        %v1036 = vpop.f32.mrf.mxu0
        %v1037 = vadd.f32 0.0, %v1036
        %v1038 = vpop.f32.mrf.mxu0
        %1039 = vmatprep.mubr.f32.mxu0 0.0
        %1040 = vmatmul.mubr.f32.gmra.mxu0 %v314
        %v1041 = vpop.f32.mrf.mxu0
        %v1042 = vadd.f32 0.0, %v1041
        %v1043 = vpop.f32.mrf.mxu0
        %1044 = vdwg.mxu0
        %v1046 = vsel %vm309, %v812, 0
        %v1049 = vsel %vm309, %v817, 0
        %v1052 = vsel %vm309, %v887, 0
        %v1055 = vsel %vm309, %v892, 0
        %v1058 = vsel %vm309, %v962, 0
        %v1061 = vsel %vm309, %v967, 0
        %v1064 = vsel %vm309, %v1037, 0
        %v1067 = vsel %vm309, %v1042, 0
        %1069 = vmatprep.subr.mxu0 0.0
        %1070 = vmatpush1.msra.mxu0 0.0
        %1071 = vmatprep.subr.mxu0 0.0
        %1072 = vmatpush1.msra.mxu0 0.0
        %1073 = vmatprep.subr.mxu0 0.0
        %1074 = vmatpush1.msra.mxu0 0.0
        %1075 = vmatprep.subr.mxu0 0.0
        %1076 = vmatpush1.msra.mxu0 0.0
        %1077 = vmatprep.subr.mxu0 0.0
        %1078 = vmatpush1.msra.mxu0 0.0
        %1079 = vmatprep.subr.mxu0 0.0
        %1080 = vmatpush1.msra.mxu0 0.0
        %1081 = vmatprep.subr.mxu0 0.0
        %1082 = vmatpush1.msra.mxu0 0.0
        %1083 = vmatprep.subr.mxu0 0.0
        %1084 = vmatpush1.msra.mxu0 0.0
        %1085 = vmatprep.subr.mxu0 0.0
        %1086 = vmatpush1.msra.mxu0 0.0
        %1087 = vmatprep.subr.mxu0 0.0
        %1088 = vmatpush1.msra.mxu0 0.0
        %1089 = vmatprep.subr.mxu0 0.0
        %1090 = vmatpush1.msra.mxu0 0.0
        %1091 = vmatprep.subr.mxu0 0.0
        %1092 = vmatpush1.msra.mxu0 0.0
        %1093 = vmatprep.subr.mxu0 0.0
        %1094 = vmatpush1.msra.mxu0 0.0
        %1095 = vmatprep.subr.mxu0 0.0
        %1096 = vmatpush1.msra.mxu0 0.0
        %1097 = vmatprep.subr.mxu0 0.0
        %1098 = vmatpush1.msra.mxu0 %v308
        %1099 = vmatprep.subr.mxu0 0.0
        %1100 = vmatpush1.msra.mxu0 %v307
        %1101 = vmatprep.subr.mxu0 0.0
        %1102 = vmatpush2.msra.mxu0 0.0
        %1103 = vmatprep.subr.mxu0 0.0
        %1104 = vmatpush2.msra.mxu0 0.0
        %1105 = vmatprep.subr.mxu0 0.0
        %1106 = vmatpush2.msra.mxu0 0.0
        %1107 = vmatprep.subr.mxu0 0.0
        %1108 = vmatpush2.msra.mxu0 0.0
        %1109 = vmatprep.subr.mxu0 0.0
        %1110 = vmatpush2.msra.mxu0 0.0
        %1111 = vmatprep.subr.mxu0 0.0
        %1112 = vmatpush2.msra.mxu0 0.0
        %1113 = vmatprep.subr.mxu0 0.0
        %1114 = vmatpush2.msra.mxu0 0.0
        %1115 = vmatprep.subr.mxu0 0.0
        %1116 = vmatpush2.msra.mxu0 0.0
        %1117 = vmatprep.subr.mxu0 0.0
        %1118 = vmatpush2.msra.mxu0 0.0
        %1119 = vmatprep.subr.mxu0 0.0
        %1120 = vmatpush2.msra.mxu0 0.0
        %1121 = vmatprep.subr.mxu0 0.0
        %1122 = vmatpush2.msra.mxu0 0.0
        %1123 = vmatprep.subr.mxu0 0.0
        %1124 = vmatpush2.msra.mxu0 0.0
        %1125 = vmatprep.subr.mxu0 0.0
        %1126 = vmatpush2.msra.mxu0 0.0
        %1127 = vmatprep.subr.mxu0 0.0
        %1128 = vmatpush2.msra.mxu0 0.0
        %1129 = vmatprep.subr.mxu0 0.0
        %1130 = vmatpush2.msra.mxu0 0.0
        %1131 = vmatprep.subr.mxu0 0.0
        %1132 = vmatpush2.msra.mxu0 0.0
        %1133 = vmatprep.mubr.f32.mxu0 0.0
        %1134 = vmatmul.mubr.f32.gmra.mxu0 %v1046
        %v1135 = vpop.f32.mrf.mxu0
        %v1136 = vadd.f32 0.0, %v1135
        %v1137 = vpop.f32.mrf.mxu0
        %1138 = vmatprep.mubr.f32.mxu0 0.0
        %1139 = vmatmul.mubr.f32.gmra.mxu0 %v1049
        %v1140 = vpop.f32.mrf.mxu0
        %v1141 = vadd.f32 0.0, %v1140
        %v1142 = vpop.f32.mrf.mxu0
        %1143 = vmatprep.mubr.f32.mxu0 0.0
        %1144 = vmatmul.mubr.f32.gmra.mxu0 %v1052
        %v1145 = vpop.f32.mrf.mxu0
        %v1146 = vadd.f32 0.0, %v1145
        %v1147 = vpop.f32.mrf.mxu0
        %1148 = vmatprep.mubr.f32.mxu0 0.0
        %1149 = vmatmul.mubr.f32.gmra.mxu0 %v1055
        %v1150 = vpop.f32.mrf.mxu0
        %v1151 = vadd.f32 0.0, %v1150
        %v1152 = vpop.f32.mrf.mxu0
        %1153 = vmatprep.mubr.f32.mxu0 0.0
        %1154 = vmatmul.mubr.f32.gmra.mxu0 %v1058
        %v1155 = vpop.f32.mrf.mxu0
        %v1156 = vadd.f32 0.0, %v1155
        %v1157 = vpop.f32.mrf.mxu0
        %1158 = vmatprep.mubr.f32.mxu0 0.0
        %1159 = vmatmul.mubr.f32.gmra.mxu0 %v1061
        %v1160 = vpop.f32.mrf.mxu0
        %v1161 = vadd.f32 0.0, %v1160
        %v1162 = vpop.f32.mrf.mxu0
        %1163 = vmatprep.mubr.f32.mxu0 0.0
        %1164 = vmatmul.mubr.f32.gmra.mxu0 %v1064
        %v1165 = vpop.f32.mrf.mxu0
        %v1166 = vadd.f32 0.0, %v1165
        %v1167 = vpop.f32.mrf.mxu0
        %1168 = vmatprep.mubr.f32.mxu0 0.0
        %1169 = vmatmul.mubr.f32.gmra.mxu0 %v1067
        %v1170 = vpop.f32.mrf.mxu0
        %v1171 = vadd.f32 0.0, %v1170
        %v1172 = vpop.f32.mrf.mxu0
        %1173 = vdwg.mxu0
        %v1174 = vmul.f32 %v289, %v289
        %v1175 = vmul.f32 %v290, %v290
        %v1176 = vmul.f32 %v291, %v291
        %v1177 = vmul.f32 %v292, %v292
        %v1178 = vmul.f32 %v293, %v293
        %v1179 = vmul.f32 %v294, %v294
        %v1180 = vmul.f32 %v295, %v295
        %v1181 = vmul.f32 %v296, %v296
        %1182 = vmatprep.subr.mxu0 0.0
        %1183 = vmatpush1.msra.mxu0 0.0
        %1184 = vmatprep.subr.mxu0 0.0
        %1185 = vmatpush1.msra.mxu0 0.0
        %1186 = vmatprep.subr.mxu0 0.0
        %1187 = vmatpush1.msra.mxu0 0.0
        %1188 = vmatprep.subr.mxu0 0.0
        %1189 = vmatpush1.msra.mxu0 0.0
        %1190 = vmatprep.subr.mxu0 0.0
        %1191 = vmatpush1.msra.mxu0 0.0
        %1192 = vmatprep.subr.mxu0 0.0
        %1193 = vmatpush1.msra.mxu0 0.0
        %1194 = vmatprep.subr.mxu0 0.0
        %1195 = vmatpush1.msra.mxu0 0.0
        %1196 = vmatprep.subr.mxu0 0.0
        %1197 = vmatpush1.msra.mxu0 0.0
        %1198 = vmatprep.subr.mxu0 0.0
        %1199 = vmatpush1.msra.mxu0 0.0
        %1200 = vmatprep.subr.mxu0 0.0
        %1201 = vmatpush1.msra.mxu0 0.0
        %1202 = vmatprep.subr.mxu0 0.0
        %1203 = vmatpush1.msra.mxu0 0.0
        %1204 = vmatprep.subr.mxu0 0.0
        %1205 = vmatpush1.msra.mxu0 0.0
        %1206 = vmatprep.subr.mxu0 0.0
        %1207 = vmatpush1.msra.mxu0 0.0
        %1208 = vmatprep.subr.mxu0 0.0
        %1209 = vmatpush1.msra.mxu0 0.0
        %1210 = vmatprep.subr.mxu0 0.0
        %1211 = vmatpush1.msra.mxu0 %v1175
        %1212 = vmatprep.subr.mxu0 0.0
        %1213 = vmatpush1.msra.mxu0 %v1174
        %1214 = vmatprep.subr.mxu0 0.0
        %1215 = vmatpush2.msra.mxu0 0.0
        %1216 = vmatprep.subr.mxu0 0.0
        %1217 = vmatpush2.msra.mxu0 0.0
        %1218 = vmatprep.subr.mxu0 0.0
        %1219 = vmatpush2.msra.mxu0 0.0
        %1220 = vmatprep.subr.mxu0 0.0
        %1221 = vmatpush2.msra.mxu0 0.0
        %1222 = vmatprep.subr.mxu0 0.0
        %1223 = vmatpush2.msra.mxu0 0.0
        %1224 = vmatprep.subr.mxu0 0.0
        %1225 = vmatpush2.msra.mxu0 0.0
        %1226 = vmatprep.subr.mxu0 0.0
        %1227 = vmatpush2.msra.mxu0 0.0
        %1228 = vmatprep.subr.mxu0 0.0
        %1229 = vmatpush2.msra.mxu0 0.0
        %1230 = vmatprep.subr.mxu0 0.0
        %1231 = vmatpush2.msra.mxu0 0.0
        %1232 = vmatprep.subr.mxu0 0.0
        %1233 = vmatpush2.msra.mxu0 0.0
        %1234 = vmatprep.subr.mxu0 0.0
        %1235 = vmatpush2.msra.mxu0 0.0
        %1236 = vmatprep.subr.mxu0 0.0
        %1237 = vmatpush2.msra.mxu0 0.0
        %1238 = vmatprep.subr.mxu0 0.0
        %1239 = vmatpush2.msra.mxu0 0.0
        %1240 = vmatprep.subr.mxu0 0.0
        %1241 = vmatpush2.msra.mxu0 0.0
        %1242 = vmatprep.subr.mxu0 0.0
        %1243 = vmatpush2.msra.mxu0 0.0
        %1244 = vmatprep.subr.mxu0 0.0
        %1245 = vmatpush2.msra.mxu0 0.0
        %1246 = vmatprep.mubr.f32.mxu0 0.0
        %1247 = vmatmul.mubr.f32.gmra.mxu0 %v311
        %v1248 = vpop.f32.mrf.mxu0
        %v1249 = vadd.f32 0.0, %v1248
        %v1250 = vpop.f32.mrf.mxu0
        %1251 = vmatprep.mubr.f32.mxu0 0.0
        %1252 = vmatmul.mubr.f32.gmra.mxu0 %v314
        %v1253 = vpop.f32.mrf.mxu0
        %v1254 = vadd.f32 0.0, %v1253
        %v1255 = vpop.f32.mrf.mxu0
        %1256 = vdwg.mxu0
        %1257 = vmatprep.subr.mxu0 0.0
        %1258 = vmatpush1.msra.mxu0 0.0
        %1259 = vmatprep.subr.mxu0 0.0
        %1260 = vmatpush1.msra.mxu0 0.0
        %1261 = vmatprep.subr.mxu0 0.0
        %1262 = vmatpush1.msra.mxu0 0.0
        %1263 = vmatprep.subr.mxu0 0.0
        %1264 = vmatpush1.msra.mxu0 0.0
        %1265 = vmatprep.subr.mxu0 0.0
        %1266 = vmatpush1.msra.mxu0 0.0
        %1267 = vmatprep.subr.mxu0 0.0
        %1268 = vmatpush1.msra.mxu0 0.0
        %1269 = vmatprep.subr.mxu0 0.0
        %1270 = vmatpush1.msra.mxu0 0.0
        %1271 = vmatprep.subr.mxu0 0.0
        %1272 = vmatpush1.msra.mxu0 0.0
        %1273 = vmatprep.subr.mxu0 0.0
        %1274 = vmatpush1.msra.mxu0 0.0
        %1275 = vmatprep.subr.mxu0 0.0
        %1276 = vmatpush1.msra.mxu0 0.0
        %1277 = vmatprep.subr.mxu0 0.0
        %1278 = vmatpush1.msra.mxu0 0.0
        %1279 = vmatprep.subr.mxu0 0.0
        %1280 = vmatpush1.msra.mxu0 0.0
        %1281 = vmatprep.subr.mxu0 0.0
        %1282 = vmatpush1.msra.mxu0 0.0
        %1283 = vmatprep.subr.mxu0 0.0
        %1284 = vmatpush1.msra.mxu0 0.0
        %1285 = vmatprep.subr.mxu0 0.0
        %1286 = vmatpush1.msra.mxu0 %v1177
        %1287 = vmatprep.subr.mxu0 0.0
        %1288 = vmatpush1.msra.mxu0 %v1176
        %1289 = vmatprep.subr.mxu0 0.0
        %1290 = vmatpush2.msra.mxu0 0.0
        %1291 = vmatprep.subr.mxu0 0.0
        %1292 = vmatpush2.msra.mxu0 0.0
        %1293 = vmatprep.subr.mxu0 0.0
        %1294 = vmatpush2.msra.mxu0 0.0
        %1295 = vmatprep.subr.mxu0 0.0
        %1296 = vmatpush2.msra.mxu0 0.0
        %1297 = vmatprep.subr.mxu0 0.0
        %1298 = vmatpush2.msra.mxu0 0.0
        %1299 = vmatprep.subr.mxu0 0.0
        %1300 = vmatpush2.msra.mxu0 0.0
        %1301 = vmatprep.subr.mxu0 0.0
        %1302 = vmatpush2.msra.mxu0 0.0
        %1303 = vmatprep.subr.mxu0 0.0
        %1304 = vmatpush2.msra.mxu0 0.0
        %1305 = vmatprep.subr.mxu0 0.0
        %1306 = vmatpush2.msra.mxu0 0.0
        %1307 = vmatprep.subr.mxu0 0.0
        %1308 = vmatpush2.msra.mxu0 0.0
        %1309 = vmatprep.subr.mxu0 0.0
        %1310 = vmatpush2.msra.mxu0 0.0
        %1311 = vmatprep.subr.mxu0 0.0
        %1312 = vmatpush2.msra.mxu0 0.0
        %1313 = vmatprep.subr.mxu0 0.0
        %1314 = vmatpush2.msra.mxu0 0.0
        %1315 = vmatprep.subr.mxu0 0.0
        %1316 = vmatpush2.msra.mxu0 0.0
        %1317 = vmatprep.subr.mxu0 0.0
        %1318 = vmatpush2.msra.mxu0 0.0
        %1319 = vmatprep.subr.mxu0 0.0
        %1320 = vmatpush2.msra.mxu0 0.0
        %1321 = vmatprep.mubr.f32.mxu0 0.0
        %1322 = vmatmul.mubr.f32.gmra.mxu0 %v311
        %v1323 = vpop.f32.mrf.mxu0
        %v1324 = vadd.f32 0.0, %v1323
        %v1325 = vpop.f32.mrf.mxu0
        %1326 = vmatprep.mubr.f32.mxu0 0.0
        %1327 = vmatmul.mubr.f32.gmra.mxu0 %v314
        %v1328 = vpop.f32.mrf.mxu0
        %v1329 = vadd.f32 0.0, %v1328
        %v1330 = vpop.f32.mrf.mxu0
        %1331 = vdwg.mxu0
        %1332 = vmatprep.subr.mxu0 0.0
        %1333 = vmatpush1.msra.mxu0 0.0
        %1334 = vmatprep.subr.mxu0 0.0
        %1335 = vmatpush1.msra.mxu0 0.0
        %1336 = vmatprep.subr.mxu0 0.0
        %1337 = vmatpush1.msra.mxu0 0.0
        %1338 = vmatprep.subr.mxu0 0.0
        %1339 = vmatpush1.msra.mxu0 0.0
        %1340 = vmatprep.subr.mxu0 0.0
        %1341 = vmatpush1.msra.mxu0 0.0
        %1342 = vmatprep.subr.mxu0 0.0
        %1343 = vmatpush1.msra.mxu0 0.0
        %1344 = vmatprep.subr.mxu0 0.0
        %1345 = vmatpush1.msra.mxu0 0.0
        %1346 = vmatprep.subr.mxu0 0.0
        %1347 = vmatpush1.msra.mxu0 0.0
        %1348 = vmatprep.subr.mxu0 0.0
        %1349 = vmatpush1.msra.mxu0 0.0
        %1350 = vmatprep.subr.mxu0 0.0
        %1351 = vmatpush1.msra.mxu0 0.0
        %1352 = vmatprep.subr.mxu0 0.0
        %1353 = vmatpush1.msra.mxu0 0.0
        %1354 = vmatprep.subr.mxu0 0.0
        %1355 = vmatpush1.msra.mxu0 0.0
        %1356 = vmatprep.subr.mxu0 0.0
        %1357 = vmatpush1.msra.mxu0 0.0
        %1358 = vmatprep.subr.mxu0 0.0
        %1359 = vmatpush1.msra.mxu0 0.0
        %1360 = vmatprep.subr.mxu0 0.0
        %1361 = vmatpush1.msra.mxu0 %v1179
        %1362 = vmatprep.subr.mxu0 0.0
        %1363 = vmatpush1.msra.mxu0 %v1178
        %1364 = vmatprep.subr.mxu0 0.0
        %1365 = vmatpush2.msra.mxu0 0.0
        %1366 = vmatprep.subr.mxu0 0.0
        %1367 = vmatpush2.msra.mxu0 0.0
        %1368 = vmatprep.subr.mxu0 0.0
        %1369 = vmatpush2.msra.mxu0 0.0
        %1370 = vmatprep.subr.mxu0 0.0
        %1371 = vmatpush2.msra.mxu0 0.0
        %1372 = vmatprep.subr.mxu0 0.0
        %1373 = vmatpush2.msra.mxu0 0.0
        %1374 = vmatprep.subr.mxu0 0.0
        %1375 = vmatpush2.msra.mxu0 0.0
        %1376 = vmatprep.subr.mxu0 0.0
        %1377 = vmatpush2.msra.mxu0 0.0
        %1378 = vmatprep.subr.mxu0 0.0
        %1379 = vmatpush2.msra.mxu0 0.0
        %1380 = vmatprep.subr.mxu0 0.0
        %1381 = vmatpush2.msra.mxu0 0.0
        %1382 = vmatprep.subr.mxu0 0.0
        %1383 = vmatpush2.msra.mxu0 0.0
        %1384 = vmatprep.subr.mxu0 0.0
        %1385 = vmatpush2.msra.mxu0 0.0
        %1386 = vmatprep.subr.mxu0 0.0
        %1387 = vmatpush2.msra.mxu0 0.0
        %1388 = vmatprep.subr.mxu0 0.0
        %1389 = vmatpush2.msra.mxu0 0.0
        %1390 = vmatprep.subr.mxu0 0.0
        %1391 = vmatpush2.msra.mxu0 0.0
        %1392 = vmatprep.subr.mxu0 0.0
        %1393 = vmatpush2.msra.mxu0 0.0
        %1394 = vmatprep.subr.mxu0 0.0
        %1395 = vmatpush2.msra.mxu0 0.0
        %1396 = vmatprep.mubr.f32.mxu0 0.0
        %1397 = vmatmul.mubr.f32.gmra.mxu0 %v311
        %v1398 = vpop.f32.mrf.mxu0
        %v1399 = vadd.f32 0.0, %v1398
        %v1400 = vpop.f32.mrf.mxu0
        %1401 = vmatprep.mubr.f32.mxu0 0.0
        %1402 = vmatmul.mubr.f32.gmra.mxu0 %v314
        %v1403 = vpop.f32.mrf.mxu0
        %v1404 = vadd.f32 0.0, %v1403
        %v1405 = vpop.f32.mrf.mxu0
        %1406 = vdwg.mxu0
        %1407 = vmatprep.subr.mxu0 0.0
        %1408 = vmatpush1.msra.mxu0 0.0
        %1409 = vmatprep.subr.mxu0 0.0
        %1410 = vmatpush1.msra.mxu0 0.0
        %1411 = vmatprep.subr.mxu0 0.0
        %1412 = vmatpush1.msra.mxu0 0.0
        %1413 = vmatprep.subr.mxu0 0.0
        %1414 = vmatpush1.msra.mxu0 0.0
        %1415 = vmatprep.subr.mxu0 0.0
        %1416 = vmatpush1.msra.mxu0 0.0
        %1417 = vmatprep.subr.mxu0 0.0
        %1418 = vmatpush1.msra.mxu0 0.0
        %1419 = vmatprep.subr.mxu0 0.0
        %1420 = vmatpush1.msra.mxu0 0.0
        %1421 = vmatprep.subr.mxu0 0.0
        %1422 = vmatpush1.msra.mxu0 0.0
        %1423 = vmatprep.subr.mxu0 0.0
        %1424 = vmatpush1.msra.mxu0 0.0
        %1425 = vmatprep.subr.mxu0 0.0
        %1426 = vmatpush1.msra.mxu0 0.0
        %1427 = vmatprep.subr.mxu0 0.0
        %1428 = vmatpush1.msra.mxu0 0.0
        %1429 = vmatprep.subr.mxu0 0.0
        %1430 = vmatpush1.msra.mxu0 0.0
        %1431 = vmatprep.subr.mxu0 0.0
        %1432 = vmatpush1.msra.mxu0 0.0
        %1433 = vmatprep.subr.mxu0 0.0
        %1434 = vmatpush1.msra.mxu0 0.0
        %1435 = vmatprep.subr.mxu0 0.0
        %1436 = vmatpush1.msra.mxu0 %v1181
        %1437 = vmatprep.subr.mxu0 0.0
        %1438 = vmatpush1.msra.mxu0 %v1180
        %1439 = vmatprep.subr.mxu0 0.0
        %1440 = vmatpush2.msra.mxu0 0.0
        %1441 = vmatprep.subr.mxu0 0.0
        %1442 = vmatpush2.msra.mxu0 0.0
        %1443 = vmatprep.subr.mxu0 0.0
        %1444 = vmatpush2.msra.mxu0 0.0
        %1445 = vmatprep.subr.mxu0 0.0
        %1446 = vmatpush2.msra.mxu0 0.0
        %1447 = vmatprep.subr.mxu0 0.0
        %1448 = vmatpush2.msra.mxu0 0.0
        %1449 = vmatprep.subr.mxu0 0.0
        %1450 = vmatpush2.msra.mxu0 0.0
        %1451 = vmatprep.subr.mxu0 0.0
        %1452 = vmatpush2.msra.mxu0 0.0
        %1453 = vmatprep.subr.mxu0 0.0
        %1454 = vmatpush2.msra.mxu0 0.0
        %1455 = vmatprep.subr.mxu0 0.0
        %1456 = vmatpush2.msra.mxu0 0.0
        %1457 = vmatprep.subr.mxu0 0.0
        %1458 = vmatpush2.msra.mxu0 0.0
        %1459 = vmatprep.subr.mxu0 0.0
        %1460 = vmatpush2.msra.mxu0 0.0
        %1461 = vmatprep.subr.mxu0 0.0
        %1462 = vmatpush2.msra.mxu0 0.0
        %1463 = vmatprep.subr.mxu0 0.0
        %1464 = vmatpush2.msra.mxu0 0.0
        %1465 = vmatprep.subr.mxu0 0.0
        %1466 = vmatpush2.msra.mxu0 0.0
        %1467 = vmatprep.subr.mxu0 0.0
        %1468 = vmatpush2.msra.mxu0 0.0
        %1469 = vmatprep.subr.mxu0 0.0
        %1470 = vmatpush2.msra.mxu0 0.0
        %1471 = vmatprep.mubr.f32.mxu0 0.0
        %1472 = vmatmul.mubr.f32.gmra.mxu0 %v311
        %v1473 = vpop.f32.mrf.mxu0
        %v1474 = vadd.f32 0.0, %v1473
        %v1475 = vpop.f32.mrf.mxu0
        %1476 = vmatprep.mubr.f32.mxu0 0.0
        %1477 = vmatmul.mubr.f32.gmra.mxu0 %v314
        %v1478 = vpop.f32.mrf.mxu0
        %v1479 = vadd.f32 0.0, %v1478
        %v1480 = vpop.f32.mrf.mxu0
        %1481 = vdwg.mxu0
        %v1483 = vsel %vm309, %v1249, 0
        %v1486 = vsel %vm309, %v1254, 0
        %v1489 = vsel %vm309, %v1324, 0
        %v1492 = vsel %vm309, %v1329, 0
        %v1495 = vsel %vm309, %v1399, 0
        %v1498 = vsel %vm309, %v1404, 0
        %v1501 = vsel %vm309, %v1474, 0
        %v1504 = vsel %vm309, %v1479, 0
        %1506 = vmatprep.subr.mxu0 0.0
        %1507 = vmatpush1.msra.mxu0 0.0
        %1508 = vmatprep.subr.mxu0 0.0
        %1509 = vmatpush1.msra.mxu0 0.0
        %1510 = vmatprep.subr.mxu0 0.0
        %1511 = vmatpush1.msra.mxu0 0.0
        %1512 = vmatprep.subr.mxu0 0.0
        %1513 = vmatpush1.msra.mxu0 0.0
        %1514 = vmatprep.subr.mxu0 0.0
        %1515 = vmatpush1.msra.mxu0 0.0
        %1516 = vmatprep.subr.mxu0 0.0
        %1517 = vmatpush1.msra.mxu0 0.0
        %1518 = vmatprep.subr.mxu0 0.0
        %1519 = vmatpush1.msra.mxu0 0.0
        %1520 = vmatprep.subr.mxu0 0.0
        %1521 = vmatpush1.msra.mxu0 0.0
        %1522 = vmatprep.subr.mxu0 0.0
        %1523 = vmatpush1.msra.mxu0 0.0
        %1524 = vmatprep.subr.mxu0 0.0
        %1525 = vmatpush1.msra.mxu0 0.0
        %1526 = vmatprep.subr.mxu0 0.0
        %1527 = vmatpush1.msra.mxu0 0.0
        %1528 = vmatprep.subr.mxu0 0.0
        %1529 = vmatpush1.msra.mxu0 0.0
        %1530 = vmatprep.subr.mxu0 0.0
        %1531 = vmatpush1.msra.mxu0 0.0
        %1532 = vmatprep.subr.mxu0 0.0
        %1533 = vmatpush1.msra.mxu0 0.0
        %1534 = vmatprep.subr.mxu0 0.0
        %1535 = vmatpush1.msra.mxu0 %v308
        %1536 = vmatprep.subr.mxu0 0.0
        %1537 = vmatpush1.msra.mxu0 %v307
        %1538 = vmatprep.subr.mxu0 0.0
        %1539 = vmatpush2.msra.mxu0 0.0
        %1540 = vmatprep.subr.mxu0 0.0
        %1541 = vmatpush2.msra.mxu0 0.0
        %1542 = vmatprep.subr.mxu0 0.0
        %1543 = vmatpush2.msra.mxu0 0.0
        %1544 = vmatprep.subr.mxu0 0.0
        %1545 = vmatpush2.msra.mxu0 0.0
        %1546 = vmatprep.subr.mxu0 0.0
        %1547 = vmatpush2.msra.mxu0 0.0
        %1548 = vmatprep.subr.mxu0 0.0
        %1549 = vmatpush2.msra.mxu0 0.0
        %1550 = vmatprep.subr.mxu0 0.0
        %1551 = vmatpush2.msra.mxu0 0.0
        %1552 = vmatprep.subr.mxu0 0.0
        %1553 = vmatpush2.msra.mxu0 0.0
        %1554 = vmatprep.subr.mxu0 0.0
        %1555 = vmatpush2.msra.mxu0 0.0
        %1556 = vmatprep.subr.mxu0 0.0
        %1557 = vmatpush2.msra.mxu0 0.0
        %1558 = vmatprep.subr.mxu0 0.0
        %1559 = vmatpush2.msra.mxu0 0.0
        %1560 = vmatprep.subr.mxu0 0.0
        %1561 = vmatpush2.msra.mxu0 0.0
        %1562 = vmatprep.subr.mxu0 0.0
        %1563 = vmatpush2.msra.mxu0 0.0
        %1564 = vmatprep.subr.mxu0 0.0
        %1565 = vmatpush2.msra.mxu0 0.0
        %1566 = vmatprep.subr.mxu0 0.0
        %1567 = vmatpush2.msra.mxu0 0.0
        %1568 = vmatprep.subr.mxu0 0.0
        %1569 = vmatpush2.msra.mxu0 0.0
        %1570 = vmatprep.mubr.f32.mxu0 0.0
        %1571 = vmatmul.mubr.f32.gmra.mxu0 %v1483
        %v1572 = vpop.f32.mrf.mxu0
        %v1573 = vadd.f32 0.0, %v1572
        %v1574 = vpop.f32.mrf.mxu0
        %1575 = vmatprep.mubr.f32.mxu0 0.0
        %1576 = vmatmul.mubr.f32.gmra.mxu0 %v1486
        %v1577 = vpop.f32.mrf.mxu0
        %v1578 = vadd.f32 0.0, %v1577
        %v1579 = vpop.f32.mrf.mxu0
        %1580 = vmatprep.mubr.f32.mxu0 0.0
        %1581 = vmatmul.mubr.f32.gmra.mxu0 %v1489
        %v1582 = vpop.f32.mrf.mxu0
        %v1583 = vadd.f32 0.0, %v1582
        %v1584 = vpop.f32.mrf.mxu0
        %1585 = vmatprep.mubr.f32.mxu0 0.0
        %1586 = vmatmul.mubr.f32.gmra.mxu0 %v1492
        %v1587 = vpop.f32.mrf.mxu0
        %v1588 = vadd.f32 0.0, %v1587
        %v1589 = vpop.f32.mrf.mxu0
        %1590 = vmatprep.mubr.f32.mxu0 0.0
        %1591 = vmatmul.mubr.f32.gmra.mxu0 %v1495
        %v1592 = vpop.f32.mrf.mxu0
        %v1593 = vadd.f32 0.0, %v1592
        %v1594 = vpop.f32.mrf.mxu0
        %1595 = vmatprep.mubr.f32.mxu0 0.0
        %1596 = vmatmul.mubr.f32.gmra.mxu0 %v1498
        %v1597 = vpop.f32.mrf.mxu0
        %v1598 = vadd.f32 0.0, %v1597
        %v1599 = vpop.f32.mrf.mxu0
        %1600 = vmatprep.mubr.f32.mxu0 0.0
        %1601 = vmatmul.mubr.f32.gmra.mxu0 %v1501
        %v1602 = vpop.f32.mrf.mxu0
        %v1603 = vadd.f32 0.0, %v1602
        %v1604 = vpop.f32.mrf.mxu0
        %1605 = vmatprep.mubr.f32.mxu0 0.0
        %1606 = vmatmul.mubr.f32.gmra.mxu0 %v1504
        %v1607 = vpop.f32.mrf.mxu0
        %v1608 = vadd.f32 0.0, %v1607
        %v1609 = vpop.f32.mrf.mxu0
        %1610 = vdwg.mxu0
        %v1611 = vmul.f32 %v297, %v297
        %v1612 = vmul.f32 %v298, %v298
        %v1613 = vmul.f32 %v299, %v299
        %v1614 = vmul.f32 %v300, %v300
        %v1615 = vmul.f32 %v301, %v301
        %v1616 = vmul.f32 %v302, %v302
        %v1617 = vmul.f32 %v303, %v303
        %v1618 = vmul.f32 %v304, %v304
        %1619 = vmatprep.subr.mxu0 0.0
        %1620 = vmatpush1.msra.mxu0 0.0
        %1621 = vmatprep.subr.mxu0 0.0
        %1622 = vmatpush1.msra.mxu0 0.0
        %1623 = vmatprep.subr.mxu0 0.0
        %1624 = vmatpush1.msra.mxu0 0.0
        %1625 = vmatprep.subr.mxu0 0.0
        %1626 = vmatpush1.msra.mxu0 0.0
        %1627 = vmatprep.subr.mxu0 0.0
        %1628 = vmatpush1.msra.mxu0 0.0
        %1629 = vmatprep.subr.mxu0 0.0
        %1630 = vmatpush1.msra.mxu0 0.0
        %1631 = vmatprep.subr.mxu0 0.0
        %1632 = vmatpush1.msra.mxu0 0.0
        %1633 = vmatprep.subr.mxu0 0.0
        %1634 = vmatpush1.msra.mxu0 0.0
        %1635 = vmatprep.subr.mxu0 0.0
        %1636 = vmatpush1.msra.mxu0 0.0
        %1637 = vmatprep.subr.mxu0 0.0
        %1638 = vmatpush1.msra.mxu0 0.0
        %1639 = vmatprep.subr.mxu0 0.0
        %1640 = vmatpush1.msra.mxu0 0.0
        %1641 = vmatprep.subr.mxu0 0.0
        %1642 = vmatpush1.msra.mxu0 0.0
        %1643 = vmatprep.subr.mxu0 0.0
        %1644 = vmatpush1.msra.mxu0 0.0
        %1645 = vmatprep.subr.mxu0 0.0
        %1646 = vmatpush1.msra.mxu0 0.0
        %1647 = vmatprep.subr.mxu0 0.0
        %1648 = vmatpush1.msra.mxu0 %v1612
        %1649 = vmatprep.subr.mxu0 0.0
        %1650 = vmatpush1.msra.mxu0 %v1611
        %1651 = vmatprep.subr.mxu0 0.0
        %1652 = vmatpush2.msra.mxu0 0.0
        %1653 = vmatprep.subr.mxu0 0.0
        %1654 = vmatpush2.msra.mxu0 0.0
        %1655 = vmatprep.subr.mxu0 0.0
        %1656 = vmatpush2.msra.mxu0 0.0
        %1657 = vmatprep.subr.mxu0 0.0
        %1658 = vmatpush2.msra.mxu0 0.0
        %1659 = vmatprep.subr.mxu0 0.0
        %1660 = vmatpush2.msra.mxu0 0.0
        %1661 = vmatprep.subr.mxu0 0.0
        %1662 = vmatpush2.msra.mxu0 0.0
        %1663 = vmatprep.subr.mxu0 0.0
        %1664 = vmatpush2.msra.mxu0 0.0
        %1665 = vmatprep.subr.mxu0 0.0
        %1666 = vmatpush2.msra.mxu0 0.0
        %1667 = vmatprep.subr.mxu0 0.0
        %1668 = vmatpush2.msra.mxu0 0.0
        %1669 = vmatprep.subr.mxu0 0.0
        %1670 = vmatpush2.msra.mxu0 0.0
        %1671 = vmatprep.subr.mxu0 0.0
        %1672 = vmatpush2.msra.mxu0 0.0
        %1673 = vmatprep.subr.mxu0 0.0
        %1674 = vmatpush2.msra.mxu0 0.0
        %1675 = vmatprep.subr.mxu0 0.0
        %1676 = vmatpush2.msra.mxu0 0.0
        %1677 = vmatprep.subr.mxu0 0.0
        %1678 = vmatpush2.msra.mxu0 0.0
        %1679 = vmatprep.subr.mxu0 0.0
        %1680 = vmatpush2.msra.mxu0 0.0
        %1681 = vmatprep.subr.mxu0 0.0
        %1682 = vmatpush2.msra.mxu0 0.0
        %1683 = vmatprep.mubr.f32.mxu0 0.0
        %1684 = vmatmul.mubr.f32.gmra.mxu0 %v311
        %v1685 = vpop.f32.mrf.mxu0
        %v1686 = vadd.f32 0.0, %v1685
        %v1687 = vpop.f32.mrf.mxu0
        %1688 = vmatprep.mubr.f32.mxu0 0.0
        %1689 = vmatmul.mubr.f32.gmra.mxu0 %v314
        %v1690 = vpop.f32.mrf.mxu0
        %v1691 = vadd.f32 0.0, %v1690
        %v1692 = vpop.f32.mrf.mxu0
        %1693 = vdwg.mxu0
        %1694 = vmatprep.subr.mxu0 0.0
        %1695 = vmatpush1.msra.mxu0 0.0
        %1696 = vmatprep.subr.mxu0 0.0
        %1697 = vmatpush1.msra.mxu0 0.0
        %1698 = vmatprep.subr.mxu0 0.0
        %1699 = vmatpush1.msra.mxu0 0.0
        %1700 = vmatprep.subr.mxu0 0.0
        %1701 = vmatpush1.msra.mxu0 0.0
        %1702 = vmatprep.subr.mxu0 0.0
        %1703 = vmatpush1.msra.mxu0 0.0
        %1704 = vmatprep.subr.mxu0 0.0
        %1705 = vmatpush1.msra.mxu0 0.0
        %1706 = vmatprep.subr.mxu0 0.0
        %1707 = vmatpush1.msra.mxu0 0.0
        %1708 = vmatprep.subr.mxu0 0.0
        %1709 = vmatpush1.msra.mxu0 0.0
        %1710 = vmatprep.subr.mxu0 0.0
        %1711 = vmatpush1.msra.mxu0 0.0
        %1712 = vmatprep.subr.mxu0 0.0
        %1713 = vmatpush1.msra.mxu0 0.0
        %1714 = vmatprep.subr.mxu0 0.0
        %1715 = vmatpush1.msra.mxu0 0.0
        %1716 = vmatprep.subr.mxu0 0.0
        %1717 = vmatpush1.msra.mxu0 0.0
        %1718 = vmatprep.subr.mxu0 0.0
        %1719 = vmatpush1.msra.mxu0 0.0
        %1720 = vmatprep.subr.mxu0 0.0
        %1721 = vmatpush1.msra.mxu0 0.0
        %1722 = vmatprep.subr.mxu0 0.0
        %1723 = vmatpush1.msra.mxu0 %v1614
        %1724 = vmatprep.subr.mxu0 0.0
        %1725 = vmatpush1.msra.mxu0 %v1613
        %1726 = vmatprep.subr.mxu0 0.0
        %1727 = vmatpush2.msra.mxu0 0.0
        %1728 = vmatprep.subr.mxu0 0.0
        %1729 = vmatpush2.msra.mxu0 0.0
        %1730 = vmatprep.subr.mxu0 0.0
        %1731 = vmatpush2.msra.mxu0 0.0
        %1732 = vmatprep.subr.mxu0 0.0
        %1733 = vmatpush2.msra.mxu0 0.0
        %1734 = vmatprep.subr.mxu0 0.0
        %1735 = vmatpush2.msra.mxu0 0.0
        %1736 = vmatprep.subr.mxu0 0.0
        %1737 = vmatpush2.msra.mxu0 0.0
        %1738 = vmatprep.subr.mxu0 0.0
        %1739 = vmatpush2.msra.mxu0 0.0
        %1740 = vmatprep.subr.mxu0 0.0
        %1741 = vmatpush2.msra.mxu0 0.0
        %1742 = vmatprep.subr.mxu0 0.0
        %1743 = vmatpush2.msra.mxu0 0.0
        %1744 = vmatprep.subr.mxu0 0.0
        %1745 = vmatpush2.msra.mxu0 0.0
        %1746 = vmatprep.subr.mxu0 0.0
        %1747 = vmatpush2.msra.mxu0 0.0
        %1748 = vmatprep.subr.mxu0 0.0
        %1749 = vmatpush2.msra.mxu0 0.0
        %1750 = vmatprep.subr.mxu0 0.0
        %1751 = vmatpush2.msra.mxu0 0.0
        %1752 = vmatprep.subr.mxu0 0.0
        %1753 = vmatpush2.msra.mxu0 0.0
        %1754 = vmatprep.subr.mxu0 0.0
        %1755 = vmatpush2.msra.mxu0 0.0
        %1756 = vmatprep.subr.mxu0 0.0
        %1757 = vmatpush2.msra.mxu0 0.0
        %1758 = vmatprep.mubr.f32.mxu0 0.0
        %1759 = vmatmul.mubr.f32.gmra.mxu0 %v311
        %v1760 = vpop.f32.mrf.mxu0
        %v1761 = vadd.f32 0.0, %v1760
        %v1762 = vpop.f32.mrf.mxu0
        %1763 = vmatprep.mubr.f32.mxu0 0.0
        %1764 = vmatmul.mubr.f32.gmra.mxu0 %v314
        %v1765 = vpop.f32.mrf.mxu0
        %v1766 = vadd.f32 0.0, %v1765
        %v1767 = vpop.f32.mrf.mxu0
        %1768 = vdwg.mxu0
        %1769 = vmatprep.subr.mxu0 0.0
        %1770 = vmatpush1.msra.mxu0 0.0
        %1771 = vmatprep.subr.mxu0 0.0
        %1772 = vmatpush1.msra.mxu0 0.0
        %1773 = vmatprep.subr.mxu0 0.0
        %1774 = vmatpush1.msra.mxu0 0.0
        %1775 = vmatprep.subr.mxu0 0.0
        %1776 = vmatpush1.msra.mxu0 0.0
        %1777 = vmatprep.subr.mxu0 0.0
        %1778 = vmatpush1.msra.mxu0 0.0
        %1779 = vmatprep.subr.mxu0 0.0
        %1780 = vmatpush1.msra.mxu0 0.0
        %1781 = vmatprep.subr.mxu0 0.0
        %1782 = vmatpush1.msra.mxu0 0.0
        %1783 = vmatprep.subr.mxu0 0.0
        %1784 = vmatpush1.msra.mxu0 0.0
        %1785 = vmatprep.subr.mxu0 0.0
        %1786 = vmatpush1.msra.mxu0 0.0
        %1787 = vmatprep.subr.mxu0 0.0
        %1788 = vmatpush1.msra.mxu0 0.0
        %1789 = vmatprep.subr.mxu0 0.0
        %1790 = vmatpush1.msra.mxu0 0.0
        %1791 = vmatprep.subr.mxu0 0.0
        %1792 = vmatpush1.msra.mxu0 0.0
        %1793 = vmatprep.subr.mxu0 0.0
        %1794 = vmatpush1.msra.mxu0 0.0
        %1795 = vmatprep.subr.mxu0 0.0
        %1796 = vmatpush1.msra.mxu0 0.0
        %1797 = vmatprep.subr.mxu0 0.0
        %1798 = vmatpush1.msra.mxu0 %v1616
        %1799 = vmatprep.subr.mxu0 0.0
        %1800 = vmatpush1.msra.mxu0 %v1615
        %1801 = vmatprep.subr.mxu0 0.0
        %1802 = vmatpush2.msra.mxu0 0.0
        %1803 = vmatprep.subr.mxu0 0.0
        %1804 = vmatpush2.msra.mxu0 0.0
        %1805 = vmatprep.subr.mxu0 0.0
        %1806 = vmatpush2.msra.mxu0 0.0
        %1807 = vmatprep.subr.mxu0 0.0
        %1808 = vmatpush2.msra.mxu0 0.0
        %1809 = vmatprep.subr.mxu0 0.0
        %1810 = vmatpush2.msra.mxu0 0.0
        %1811 = vmatprep.subr.mxu0 0.0
        %1812 = vmatpush2.msra.mxu0 0.0
        %1813 = vmatprep.subr.mxu0 0.0
        %1814 = vmatpush2.msra.mxu0 0.0
        %1815 = vmatprep.subr.mxu0 0.0
        %1816 = vmatpush2.msra.mxu0 0.0
        %1817 = vmatprep.subr.mxu0 0.0
        %1818 = vmatpush2.msra.mxu0 0.0
        %1819 = vmatprep.subr.mxu0 0.0
        %1820 = vmatpush2.msra.mxu0 0.0
        %1821 = vmatprep.subr.mxu0 0.0
        %1822 = vmatpush2.msra.mxu0 0.0
        %1823 = vmatprep.subr.mxu0 0.0
        %1824 = vmatpush2.msra.mxu0 0.0
        %1825 = vmatprep.subr.mxu0 0.0
        %1826 = vmatpush2.msra.mxu0 0.0
        %1827 = vmatprep.subr.mxu0 0.0
        %1828 = vmatpush2.msra.mxu0 0.0
        %1829 = vmatprep.subr.mxu0 0.0
        %1830 = vmatpush2.msra.mxu0 0.0
        %1831 = vmatprep.subr.mxu0 0.0
        %1832 = vmatpush2.msra.mxu0 0.0
        %1833 = vmatprep.mubr.f32.mxu0 0.0
        %1834 = vmatmul.mubr.f32.gmra.mxu0 %v311
        %v1835 = vpop.f32.mrf.mxu0
        %v1836 = vadd.f32 0.0, %v1835
        %v1837 = vpop.f32.mrf.mxu0
        %1838 = vmatprep.mubr.f32.mxu0 0.0
        %1839 = vmatmul.mubr.f32.gmra.mxu0 %v314
        %v1840 = vpop.f32.mrf.mxu0
        %v1841 = vadd.f32 0.0, %v1840
        %v1842 = vpop.f32.mrf.mxu0
        %1843 = vdwg.mxu0
        %1844 = vmatprep.subr.mxu0 0.0
        %1845 = vmatpush1.msra.mxu0 0.0
        %1846 = vmatprep.subr.mxu0 0.0
        %1847 = vmatpush1.msra.mxu0 0.0
        %1848 = vmatprep.subr.mxu0 0.0
        %1849 = vmatpush1.msra.mxu0 0.0
        %1850 = vmatprep.subr.mxu0 0.0
        %1851 = vmatpush1.msra.mxu0 0.0
        %1852 = vmatprep.subr.mxu0 0.0
        %1853 = vmatpush1.msra.mxu0 0.0
        %1854 = vmatprep.subr.mxu0 0.0
        %1855 = vmatpush1.msra.mxu0 0.0
        %1856 = vmatprep.subr.mxu0 0.0
        %1857 = vmatpush1.msra.mxu0 0.0
        %1858 = vmatprep.subr.mxu0 0.0
        %1859 = vmatpush1.msra.mxu0 0.0
        %1860 = vmatprep.subr.mxu0 0.0
        %1861 = vmatpush1.msra.mxu0 0.0
        %1862 = vmatprep.subr.mxu0 0.0
        %1863 = vmatpush1.msra.mxu0 0.0
        %1864 = vmatprep.subr.mxu0 0.0
        %1865 = vmatpush1.msra.mxu0 0.0
        %1866 = vmatprep.subr.mxu0 0.0
        %1867 = vmatpush1.msra.mxu0 0.0
        %1868 = vmatprep.subr.mxu0 0.0
        %1869 = vmatpush1.msra.mxu0 0.0
        %1870 = vmatprep.subr.mxu0 0.0
        %1871 = vmatpush1.msra.mxu0 0.0
        %1872 = vmatprep.subr.mxu0 0.0
        %1873 = vmatpush1.msra.mxu0 %v1618
        %1874 = vmatprep.subr.mxu0 0.0
        %1875 = vmatpush1.msra.mxu0 %v1617
        %1876 = vmatprep.subr.mxu0 0.0
        %1877 = vmatpush2.msra.mxu0 0.0
        %1878 = vmatprep.subr.mxu0 0.0
        %1879 = vmatpush2.msra.mxu0 0.0
        %1880 = vmatprep.subr.mxu0 0.0
        %1881 = vmatpush2.msra.mxu0 0.0
        %1882 = vmatprep.subr.mxu0 0.0
        %1883 = vmatpush2.msra.mxu0 0.0
        %1884 = vmatprep.subr.mxu0 0.0
        %1885 = vmatpush2.msra.mxu0 0.0
        %1886 = vmatprep.subr.mxu0 0.0
        %1887 = vmatpush2.msra.mxu0 0.0
        %1888 = vmatprep.subr.mxu0 0.0
        %1889 = vmatpush2.msra.mxu0 0.0
        %1890 = vmatprep.subr.mxu0 0.0
        %1891 = vmatpush2.msra.mxu0 0.0
        %1892 = vmatprep.subr.mxu0 0.0
        %1893 = vmatpush2.msra.mxu0 0.0
        %1894 = vmatprep.subr.mxu0 0.0
        %1895 = vmatpush2.msra.mxu0 0.0
        %1896 = vmatprep.subr.mxu0 0.0
        %1897 = vmatpush2.msra.mxu0 0.0
        %1898 = vmatprep.subr.mxu0 0.0
        %1899 = vmatpush2.msra.mxu0 0.0
        %1900 = vmatprep.subr.mxu0 0.0
        %1901 = vmatpush2.msra.mxu0 0.0
        %1902 = vmatprep.subr.mxu0 0.0
        %1903 = vmatpush2.msra.mxu0 0.0
        %1904 = vmatprep.subr.mxu0 0.0
        %1905 = vmatpush2.msra.mxu0 0.0
        %1906 = vmatprep.subr.mxu0 0.0
        %1907 = vmatpush2.msra.mxu0 0.0
        %1908 = vmatprep.mubr.f32.mxu0 0.0
        %1909 = vmatmul.mubr.f32.gmra.mxu0 %v311
        %v1910 = vpop.f32.mrf.mxu0
        %v1911 = vadd.f32 0.0, %v1910
        %v1912 = vpop.f32.mrf.mxu0
        %1913 = vmatprep.mubr.f32.mxu0 0.0
        %1914 = vmatmul.mubr.f32.gmra.mxu0 %v314
        %v1915 = vpop.f32.mrf.mxu0
        %v1916 = vadd.f32 0.0, %v1915
        %v1917 = vpop.f32.mrf.mxu0
        %1918 = vdwg.mxu0
        %v1920 = vsel %vm309, %v1686, 0
        %v1923 = vsel %vm309, %v1691, 0
        %v1926 = vsel %vm309, %v1761, 0
        %v1929 = vsel %vm309, %v1766, 0
        %v1932 = vsel %vm309, %v1836, 0
        %v1935 = vsel %vm309, %v1841, 0
        %v1938 = vsel %vm309, %v1911, 0
        %v1941 = vsel %vm309, %v1916, 0
        %1943 = vmatprep.subr.mxu0 0.0
        %1944 = vmatpush1.msra.mxu0 0.0
        %1945 = vmatprep.subr.mxu0 0.0
        %1946 = vmatpush1.msra.mxu0 0.0
        %1947 = vmatprep.subr.mxu0 0.0
        %1948 = vmatpush1.msra.mxu0 0.0
        %1949 = vmatprep.subr.mxu0 0.0
        %1950 = vmatpush1.msra.mxu0 0.0
        %1951 = vmatprep.subr.mxu0 0.0
        %1952 = vmatpush1.msra.mxu0 0.0
        %1953 = vmatprep.subr.mxu0 0.0
        %1954 = vmatpush1.msra.mxu0 0.0
        %1955 = vmatprep.subr.mxu0 0.0
        %1956 = vmatpush1.msra.mxu0 0.0
        %1957 = vmatprep.subr.mxu0 0.0
        %1958 = vmatpush1.msra.mxu0 0.0
        %1959 = vmatprep.subr.mxu0 0.0
        %1960 = vmatpush1.msra.mxu0 0.0
        %1961 = vmatprep.subr.mxu0 0.0
        %1962 = vmatpush1.msra.mxu0 0.0
        %1963 = vmatprep.subr.mxu0 0.0
        %1964 = vmatpush1.msra.mxu0 0.0
        %1965 = vmatprep.subr.mxu0 0.0
        %1966 = vmatpush1.msra.mxu0 0.0
        %1967 = vmatprep.subr.mxu0 0.0
        %1968 = vmatpush1.msra.mxu0 0.0
        %1969 = vmatprep.subr.mxu0 0.0
        %1970 = vmatpush1.msra.mxu0 0.0
        %1971 = vmatprep.subr.mxu0 0.0
        %1972 = vmatpush1.msra.mxu0 %v308
        %1973 = vmatprep.subr.mxu0 0.0
        %1974 = vmatpush1.msra.mxu0 %v307
        %1975 = vmatprep.subr.mxu0 0.0
        %1976 = vmatpush2.msra.mxu0 0.0
        %1977 = vmatprep.subr.mxu0 0.0
        %1978 = vmatpush2.msra.mxu0 0.0
        %1979 = vmatprep.subr.mxu0 0.0
        %1980 = vmatpush2.msra.mxu0 0.0
        %1981 = vmatprep.subr.mxu0 0.0
        %1982 = vmatpush2.msra.mxu0 0.0
        %1983 = vmatprep.subr.mxu0 0.0
        %1984 = vmatpush2.msra.mxu0 0.0
        %1985 = vmatprep.subr.mxu0 0.0
        %1986 = vmatpush2.msra.mxu0 0.0
        %1987 = vmatprep.subr.mxu0 0.0
        %1988 = vmatpush2.msra.mxu0 0.0
        %1989 = vmatprep.subr.mxu0 0.0
        %1990 = vmatpush2.msra.mxu0 0.0
        %1991 = vmatprep.subr.mxu0 0.0
        %1992 = vmatpush2.msra.mxu0 0.0
        %1993 = vmatprep.subr.mxu0 0.0
        %1994 = vmatpush2.msra.mxu0 0.0
        %1995 = vmatprep.subr.mxu0 0.0
        %1996 = vmatpush2.msra.mxu0 0.0
        %1997 = vmatprep.subr.mxu0 0.0
        %1998 = vmatpush2.msra.mxu0 0.0
        %1999 = vmatprep.subr.mxu0 0.0
        %2000 = vmatpush2.msra.mxu0 0.0
        %2001 = vmatprep.subr.mxu0 0.0
        %2002 = vmatpush2.msra.mxu0 0.0
        %2003 = vmatprep.subr.mxu0 0.0
        %2004 = vmatpush2.msra.mxu0 0.0
        %2005 = vmatprep.subr.mxu0 0.0
        %2006 = vmatpush2.msra.mxu0 0.0
        %2007 = vmatprep.mubr.f32.mxu0 0.0
        %2008 = vmatmul.mubr.f32.gmra.mxu0 %v1920
        %v2009 = vpop.f32.mrf.mxu0
        %v2010 = vadd.f32 0.0, %v2009
        %v2011 = vpop.f32.mrf.mxu0
        %2012 = vmatprep.mubr.f32.mxu0 0.0
        %2013 = vmatmul.mubr.f32.gmra.mxu0 %v1923
        %v2014 = vpop.f32.mrf.mxu0
        %v2015 = vadd.f32 0.0, %v2014
        %v2016 = vpop.f32.mrf.mxu0
        %2017 = vmatprep.mubr.f32.mxu0 0.0
        %2018 = vmatmul.mubr.f32.gmra.mxu0 %v1926
        %v2019 = vpop.f32.mrf.mxu0
        %v2020 = vadd.f32 0.0, %v2019
        %v2021 = vpop.f32.mrf.mxu0
        %2022 = vmatprep.mubr.f32.mxu0 0.0
        %2023 = vmatmul.mubr.f32.gmra.mxu0 %v1929
        %v2024 = vpop.f32.mrf.mxu0
        %v2025 = vadd.f32 0.0, %v2024
        %v2026 = vpop.f32.mrf.mxu0
        %2027 = vmatprep.mubr.f32.mxu0 0.0
        %2028 = vmatmul.mubr.f32.gmra.mxu0 %v1932
        %v2029 = vpop.f32.mrf.mxu0
        %v2030 = vadd.f32 0.0, %v2029
        %v2031 = vpop.f32.mrf.mxu0
        %2032 = vmatprep.mubr.f32.mxu0 0.0
        %2033 = vmatmul.mubr.f32.gmra.mxu0 %v1935
        %v2034 = vpop.f32.mrf.mxu0
        %v2035 = vadd.f32 0.0, %v2034
        %v2036 = vpop.f32.mrf.mxu0
        %2037 = vmatprep.mubr.f32.mxu0 0.0
        %2038 = vmatmul.mubr.f32.gmra.mxu0 %v1938
        %v2039 = vpop.f32.mrf.mxu0
        %v2040 = vadd.f32 0.0, %v2039
        %v2041 = vpop.f32.mrf.mxu0
        %2042 = vmatprep.mubr.f32.mxu0 0.0
        %2043 = vmatmul.mubr.f32.gmra.mxu0 %v1941
        %v2044 = vpop.f32.mrf.mxu0
        %v2045 = vadd.f32 0.0, %v2044
        %v2046 = vpop.f32.mrf.mxu0
        %2047 = vdwg.mxu0
        %v2048 = vmul.f32 %v289, %v297
        %v2049 = vmul.f32 %v290, %v298
        %v2050 = vmul.f32 %v291, %v299
        %v2051 = vmul.f32 %v292, %v300
        %v2052 = vmul.f32 %v293, %v301
        %v2053 = vmul.f32 %v294, %v302
        %v2054 = vmul.f32 %v295, %v303
        %v2055 = vmul.f32 %v296, %v304
        %2056 = vmatprep.subr.mxu0 0.0
        %2057 = vmatpush1.msra.mxu0 0.0
        %2058 = vmatprep.subr.mxu0 0.0
        %2059 = vmatpush1.msra.mxu0 0.0
        %2060 = vmatprep.subr.mxu0 0.0
        %2061 = vmatpush1.msra.mxu0 0.0
        %2062 = vmatprep.subr.mxu0 0.0
        %2063 = vmatpush1.msra.mxu0 0.0
        %2064 = vmatprep.subr.mxu0 0.0
        %2065 = vmatpush1.msra.mxu0 0.0
        %2066 = vmatprep.subr.mxu0 0.0
        %2067 = vmatpush1.msra.mxu0 0.0
        %2068 = vmatprep.subr.mxu0 0.0
        %2069 = vmatpush1.msra.mxu0 0.0
        %2070 = vmatprep.subr.mxu0 0.0
        %2071 = vmatpush1.msra.mxu0 0.0
        %2072 = vmatprep.subr.mxu0 0.0
        %2073 = vmatpush1.msra.mxu0 0.0
        %2074 = vmatprep.subr.mxu0 0.0
        %2075 = vmatpush1.msra.mxu0 0.0
        %2076 = vmatprep.subr.mxu0 0.0
        %2077 = vmatpush1.msra.mxu0 0.0
        %2078 = vmatprep.subr.mxu0 0.0
        %2079 = vmatpush1.msra.mxu0 0.0
        %2080 = vmatprep.subr.mxu0 0.0
        %2081 = vmatpush1.msra.mxu0 0.0
        %2082 = vmatprep.subr.mxu0 0.0
        %2083 = vmatpush1.msra.mxu0 0.0
        %2084 = vmatprep.subr.mxu0 0.0
        %2085 = vmatpush1.msra.mxu0 %v2049
        %2086 = vmatprep.subr.mxu0 0.0
        %2087 = vmatpush1.msra.mxu0 %v2048
        %2088 = vmatprep.subr.mxu0 0.0
        %2089 = vmatpush2.msra.mxu0 0.0
        %2090 = vmatprep.subr.mxu0 0.0
        %2091 = vmatpush2.msra.mxu0 0.0
        %2092 = vmatprep.subr.mxu0 0.0
        %2093 = vmatpush2.msra.mxu0 0.0
        %2094 = vmatprep.subr.mxu0 0.0
        %2095 = vmatpush2.msra.mxu0 0.0
        %2096 = vmatprep.subr.mxu0 0.0
        %2097 = vmatpush2.msra.mxu0 0.0
        %2098 = vmatprep.subr.mxu0 0.0
        %2099 = vmatpush2.msra.mxu0 0.0
        %2100 = vmatprep.subr.mxu0 0.0
        %2101 = vmatpush2.msra.mxu0 0.0
        %2102 = vmatprep.subr.mxu0 0.0
        %2103 = vmatpush2.msra.mxu0 0.0
        %2104 = vmatprep.subr.mxu0 0.0
        %2105 = vmatpush2.msra.mxu0 0.0
        %2106 = vmatprep.subr.mxu0 0.0
        %2107 = vmatpush2.msra.mxu0 0.0
        %2108 = vmatprep.subr.mxu0 0.0
        %2109 = vmatpush2.msra.mxu0 0.0
        %2110 = vmatprep.subr.mxu0 0.0
        %2111 = vmatpush2.msra.mxu0 0.0
        %2112 = vmatprep.subr.mxu0 0.0
        %2113 = vmatpush2.msra.mxu0 0.0
        %2114 = vmatprep.subr.mxu0 0.0
        %2115 = vmatpush2.msra.mxu0 0.0
        %2116 = vmatprep.subr.mxu0 0.0
        %2117 = vmatpush2.msra.mxu0 0.0
        %2118 = vmatprep.subr.mxu0 0.0
        %2119 = vmatpush2.msra.mxu0 0.0
        %2120 = vmatprep.mubr.f32.mxu0 0.0
        %2121 = vmatmul.mubr.f32.gmra.mxu0 %v311
        %v2122 = vpop.f32.mrf.mxu0
        %v2123 = vadd.f32 0.0, %v2122
        %v2124 = vpop.f32.mrf.mxu0
        %2125 = vmatprep.mubr.f32.mxu0 0.0
        %2126 = vmatmul.mubr.f32.gmra.mxu0 %v314
        %v2127 = vpop.f32.mrf.mxu0
        %v2128 = vadd.f32 0.0, %v2127
        %v2129 = vpop.f32.mrf.mxu0
        %2130 = vdwg.mxu0
        %2131 = vmatprep.subr.mxu0 0.0
        %2132 = vmatpush1.msra.mxu0 0.0
        %2133 = vmatprep.subr.mxu0 0.0
        %2134 = vmatpush1.msra.mxu0 0.0
        %2135 = vmatprep.subr.mxu0 0.0
        %2136 = vmatpush1.msra.mxu0 0.0
        %2137 = vmatprep.subr.mxu0 0.0
        %2138 = vmatpush1.msra.mxu0 0.0
        %2139 = vmatprep.subr.mxu0 0.0
        %2140 = vmatpush1.msra.mxu0 0.0
        %2141 = vmatprep.subr.mxu0 0.0
        %2142 = vmatpush1.msra.mxu0 0.0
        %2143 = vmatprep.subr.mxu0 0.0
        %2144 = vmatpush1.msra.mxu0 0.0
        %2145 = vmatprep.subr.mxu0 0.0
        %2146 = vmatpush1.msra.mxu0 0.0
        %2147 = vmatprep.subr.mxu0 0.0
        %2148 = vmatpush1.msra.mxu0 0.0
        %2149 = vmatprep.subr.mxu0 0.0
        %2150 = vmatpush1.msra.mxu0 0.0
        %2151 = vmatprep.subr.mxu0 0.0
        %2152 = vmatpush1.msra.mxu0 0.0
        %2153 = vmatprep.subr.mxu0 0.0
        %2154 = vmatpush1.msra.mxu0 0.0
        %2155 = vmatprep.subr.mxu0 0.0
        %2156 = vmatpush1.msra.mxu0 0.0
        %2157 = vmatprep.subr.mxu0 0.0
        %2158 = vmatpush1.msra.mxu0 0.0
        %2159 = vmatprep.subr.mxu0 0.0
        %2160 = vmatpush1.msra.mxu0 %v2051
        %2161 = vmatprep.subr.mxu0 0.0
        %2162 = vmatpush1.msra.mxu0 %v2050
        %2163 = vmatprep.subr.mxu0 0.0
        %2164 = vmatpush2.msra.mxu0 0.0
        %2165 = vmatprep.subr.mxu0 0.0
        %2166 = vmatpush2.msra.mxu0 0.0
        %2167 = vmatprep.subr.mxu0 0.0
        %2168 = vmatpush2.msra.mxu0 0.0
        %2169 = vmatprep.subr.mxu0 0.0
        %2170 = vmatpush2.msra.mxu0 0.0
        %2171 = vmatprep.subr.mxu0 0.0
        %2172 = vmatpush2.msra.mxu0 0.0
        %2173 = vmatprep.subr.mxu0 0.0
        %2174 = vmatpush2.msra.mxu0 0.0
        %2175 = vmatprep.subr.mxu0 0.0
        %2176 = vmatpush2.msra.mxu0 0.0
        %2177 = vmatprep.subr.mxu0 0.0
        %2178 = vmatpush2.msra.mxu0 0.0
        %2179 = vmatprep.subr.mxu0 0.0
        %2180 = vmatpush2.msra.mxu0 0.0
        %2181 = vmatprep.subr.mxu0 0.0
        %2182 = vmatpush2.msra.mxu0 0.0
        %2183 = vmatprep.subr.mxu0 0.0
        %2184 = vmatpush2.msra.mxu0 0.0
        %2185 = vmatprep.subr.mxu0 0.0
        %2186 = vmatpush2.msra.mxu0 0.0
        %2187 = vmatprep.subr.mxu0 0.0
        %2188 = vmatpush2.msra.mxu0 0.0
        %2189 = vmatprep.subr.mxu0 0.0
        %2190 = vmatpush2.msra.mxu0 0.0
        %2191 = vmatprep.subr.mxu0 0.0
        %2192 = vmatpush2.msra.mxu0 0.0
        %2193 = vmatprep.subr.mxu0 0.0
        %2194 = vmatpush2.msra.mxu0 0.0
        %2195 = vmatprep.mubr.f32.mxu0 0.0
        %2196 = vmatmul.mubr.f32.gmra.mxu0 %v311
        %v2197 = vpop.f32.mrf.mxu0
        %v2198 = vadd.f32 0.0, %v2197
        %v2199 = vpop.f32.mrf.mxu0
        %2200 = vmatprep.mubr.f32.mxu0 0.0
        %2201 = vmatmul.mubr.f32.gmra.mxu0 %v314
        %v2202 = vpop.f32.mrf.mxu0
        %v2203 = vadd.f32 0.0, %v2202
        %v2204 = vpop.f32.mrf.mxu0
        %2205 = vdwg.mxu0
        %2206 = vmatprep.subr.mxu0 0.0
        %2207 = vmatpush1.msra.mxu0 0.0
        %2208 = vmatprep.subr.mxu0 0.0
        %2209 = vmatpush1.msra.mxu0 0.0
        %2210 = vmatprep.subr.mxu0 0.0
        %2211 = vmatpush1.msra.mxu0 0.0
        %2212 = vmatprep.subr.mxu0 0.0
        %2213 = vmatpush1.msra.mxu0 0.0
        %2214 = vmatprep.subr.mxu0 0.0
        %2215 = vmatpush1.msra.mxu0 0.0
        %2216 = vmatprep.subr.mxu0 0.0
        %2217 = vmatpush1.msra.mxu0 0.0
        %2218 = vmatprep.subr.mxu0 0.0
        %2219 = vmatpush1.msra.mxu0 0.0
        %2220 = vmatprep.subr.mxu0 0.0
        %2221 = vmatpush1.msra.mxu0 0.0
        %2222 = vmatprep.subr.mxu0 0.0
        %2223 = vmatpush1.msra.mxu0 0.0
        %2224 = vmatprep.subr.mxu0 0.0
        %2225 = vmatpush1.msra.mxu0 0.0
        %2226 = vmatprep.subr.mxu0 0.0
        %2227 = vmatpush1.msra.mxu0 0.0
        %2228 = vmatprep.subr.mxu0 0.0
        %2229 = vmatpush1.msra.mxu0 0.0
        %2230 = vmatprep.subr.mxu0 0.0
        %2231 = vmatpush1.msra.mxu0 0.0
        %2232 = vmatprep.subr.mxu0 0.0
        %2233 = vmatpush1.msra.mxu0 0.0
        %2234 = vmatprep.subr.mxu0 0.0
        %2235 = vmatpush1.msra.mxu0 %v2053
        %2236 = vmatprep.subr.mxu0 0.0
        %2237 = vmatpush1.msra.mxu0 %v2052
        %2238 = vmatprep.subr.mxu0 0.0
        %2239 = vmatpush2.msra.mxu0 0.0
        %2240 = vmatprep.subr.mxu0 0.0
        %2241 = vmatpush2.msra.mxu0 0.0
        %2242 = vmatprep.subr.mxu0 0.0
        %2243 = vmatpush2.msra.mxu0 0.0
        %2244 = vmatprep.subr.mxu0 0.0
        %2245 = vmatpush2.msra.mxu0 0.0
        %2246 = vmatprep.subr.mxu0 0.0
        %2247 = vmatpush2.msra.mxu0 0.0
        %2248 = vmatprep.subr.mxu0 0.0
        %2249 = vmatpush2.msra.mxu0 0.0
        %2250 = vmatprep.subr.mxu0 0.0
        %2251 = vmatpush2.msra.mxu0 0.0
        %2252 = vmatprep.subr.mxu0 0.0
        %2253 = vmatpush2.msra.mxu0 0.0
        %2254 = vmatprep.subr.mxu0 0.0
        %2255 = vmatpush2.msra.mxu0 0.0
        %2256 = vmatprep.subr.mxu0 0.0
        %2257 = vmatpush2.msra.mxu0 0.0
        %2258 = vmatprep.subr.mxu0 0.0
        %2259 = vmatpush2.msra.mxu0 0.0
        %2260 = vmatprep.subr.mxu0 0.0
        %2261 = vmatpush2.msra.mxu0 0.0
        %2262 = vmatprep.subr.mxu0 0.0
        %2263 = vmatpush2.msra.mxu0 0.0
        %2264 = vmatprep.subr.mxu0 0.0
        %2265 = vmatpush2.msra.mxu0 0.0
        %2266 = vmatprep.subr.mxu0 0.0
        %2267 = vmatpush2.msra.mxu0 0.0
        %2268 = vmatprep.subr.mxu0 0.0
        %2269 = vmatpush2.msra.mxu0 0.0
        %2270 = vmatprep.mubr.f32.mxu0 0.0
        %2271 = vmatmul.mubr.f32.gmra.mxu0 %v311
        %v2272 = vpop.f32.mrf.mxu0
        %v2273 = vadd.f32 0.0, %v2272
        %v2274 = vpop.f32.mrf.mxu0
        %2275 = vmatprep.mubr.f32.mxu0 0.0
        %2276 = vmatmul.mubr.f32.gmra.mxu0 %v314
        %v2277 = vpop.f32.mrf.mxu0
        %v2278 = vadd.f32 0.0, %v2277
        %v2279 = vpop.f32.mrf.mxu0
        %2280 = vdwg.mxu0
        %2281 = vmatprep.subr.mxu0 0.0
        %2282 = vmatpush1.msra.mxu0 0.0
        %2283 = vmatprep.subr.mxu0 0.0
        %2284 = vmatpush1.msra.mxu0 0.0
        %2285 = vmatprep.subr.mxu0 0.0
        %2286 = vmatpush1.msra.mxu0 0.0
        %2287 = vmatprep.subr.mxu0 0.0
        %2288 = vmatpush1.msra.mxu0 0.0
        %2289 = vmatprep.subr.mxu0 0.0
        %2290 = vmatpush1.msra.mxu0 0.0
        %2291 = vmatprep.subr.mxu0 0.0
        %2292 = vmatpush1.msra.mxu0 0.0
        %2293 = vmatprep.subr.mxu0 0.0
        %2294 = vmatpush1.msra.mxu0 0.0
        %2295 = vmatprep.subr.mxu0 0.0
        %2296 = vmatpush1.msra.mxu0 0.0
        %2297 = vmatprep.subr.mxu0 0.0
        %2298 = vmatpush1.msra.mxu0 0.0
        %2299 = vmatprep.subr.mxu0 0.0
        %2300 = vmatpush1.msra.mxu0 0.0
        %2301 = vmatprep.subr.mxu0 0.0
        %2302 = vmatpush1.msra.mxu0 0.0
        %2303 = vmatprep.subr.mxu0 0.0
        %2304 = vmatpush1.msra.mxu0 0.0
        %2305 = vmatprep.subr.mxu0 0.0
        %2306 = vmatpush1.msra.mxu0 0.0
        %2307 = vmatprep.subr.mxu0 0.0
        %2308 = vmatpush1.msra.mxu0 0.0
        %2309 = vmatprep.subr.mxu0 0.0
        %2310 = vmatpush1.msra.mxu0 %v2055
        %2311 = vmatprep.subr.mxu0 0.0
        %2312 = vmatpush1.msra.mxu0 %v2054
        %2313 = vmatprep.subr.mxu0 0.0
        %2314 = vmatpush2.msra.mxu0 0.0
        %2315 = vmatprep.subr.mxu0 0.0
        %2316 = vmatpush2.msra.mxu0 0.0
        %2317 = vmatprep.subr.mxu0 0.0
        %2318 = vmatpush2.msra.mxu0 0.0
        %2319 = vmatprep.subr.mxu0 0.0
        %2320 = vmatpush2.msra.mxu0 0.0
        %2321 = vmatprep.subr.mxu0 0.0
        %2322 = vmatpush2.msra.mxu0 0.0
        %2323 = vmatprep.subr.mxu0 0.0
        %2324 = vmatpush2.msra.mxu0 0.0
        %2325 = vmatprep.subr.mxu0 0.0
        %2326 = vmatpush2.msra.mxu0 0.0
        %2327 = vmatprep.subr.mxu0 0.0
        %2328 = vmatpush2.msra.mxu0 0.0
        %2329 = vmatprep.subr.mxu0 0.0
        %2330 = vmatpush2.msra.mxu0 0.0
        %2331 = vmatprep.subr.mxu0 0.0
        %2332 = vmatpush2.msra.mxu0 0.0
        %2333 = vmatprep.subr.mxu0 0.0
        %2334 = vmatpush2.msra.mxu0 0.0
        %2335 = vmatprep.subr.mxu0 0.0
        %2336 = vmatpush2.msra.mxu0 0.0
        %2337 = vmatprep.subr.mxu0 0.0
        %2338 = vmatpush2.msra.mxu0 0.0
        %2339 = vmatprep.subr.mxu0 0.0
        %2340 = vmatpush2.msra.mxu0 0.0
        %2341 = vmatprep.subr.mxu0 0.0
        %2342 = vmatpush2.msra.mxu0 0.0
        %2343 = vmatprep.subr.mxu0 0.0
        %2344 = vmatpush2.msra.mxu0 0.0
        %2345 = vmatprep.mubr.f32.mxu0 0.0
        %2346 = vmatmul.mubr.f32.gmra.mxu0 %v311
        %v2347 = vpop.f32.mrf.mxu0
        %v2348 = vadd.f32 0.0, %v2347
        %v2349 = vpop.f32.mrf.mxu0
        %2350 = vmatprep.mubr.f32.mxu0 0.0
        %2351 = vmatmul.mubr.f32.gmra.mxu0 %v314
        %v2352 = vpop.f32.mrf.mxu0
        %v2353 = vadd.f32 0.0, %v2352
        %v2354 = vpop.f32.mrf.mxu0
        %2355 = vdwg.mxu0
        %v2357 = vsel %vm309, %v2123, 0
        %v2360 = vsel %vm309, %v2128, 0
        %v2363 = vsel %vm309, %v2198, 0
        %v2366 = vsel %vm309, %v2203, 0
        %v2369 = vsel %vm309, %v2273, 0
        %v2372 = vsel %vm309, %v2278, 0
        %v2375 = vsel %vm309, %v2348, 0
        %v2378 = vsel %vm309, %v2353, 0
        %2380 = vmatprep.subr.mxu0 0.0
        %2381 = vmatpush1.msra.mxu0 0.0
        %2382 = vmatprep.subr.mxu0 0.0
        %2383 = vmatpush1.msra.mxu0 0.0
        %2384 = vmatprep.subr.mxu0 0.0
        %2385 = vmatpush1.msra.mxu0 0.0
        %2386 = vmatprep.subr.mxu0 0.0
        %2387 = vmatpush1.msra.mxu0 0.0
        %2388 = vmatprep.subr.mxu0 0.0
        %2389 = vmatpush1.msra.mxu0 0.0
        %2390 = vmatprep.subr.mxu0 0.0
        %2391 = vmatpush1.msra.mxu0 0.0
        %2392 = vmatprep.subr.mxu0 0.0
        %2393 = vmatpush1.msra.mxu0 0.0
        %2394 = vmatprep.subr.mxu0 0.0
        %2395 = vmatpush1.msra.mxu0 0.0
        %2396 = vmatprep.subr.mxu0 0.0
        %2397 = vmatpush1.msra.mxu0 0.0
        %2398 = vmatprep.subr.mxu0 0.0
        %2399 = vmatpush1.msra.mxu0 0.0
        %2400 = vmatprep.subr.mxu0 0.0
        %2401 = vmatpush1.msra.mxu0 0.0
        %2402 = vmatprep.subr.mxu0 0.0
        %2403 = vmatpush1.msra.mxu0 0.0
        %2404 = vmatprep.subr.mxu0 0.0
        %2405 = vmatpush1.msra.mxu0 0.0
        %2406 = vmatprep.subr.mxu0 0.0
        %2407 = vmatpush1.msra.mxu0 0.0
        %2408 = vmatprep.subr.mxu0 0.0
        %2409 = vmatpush1.msra.mxu0 %v308
        %2410 = vmatprep.subr.mxu0 0.0
        %2411 = vmatpush1.msra.mxu0 %v307
        %2412 = vmatprep.subr.mxu0 0.0
        %2413 = vmatpush2.msra.mxu0 0.0
        %2414 = vmatprep.subr.mxu0 0.0
        %2415 = vmatpush2.msra.mxu0 0.0
        %2416 = vmatprep.subr.mxu0 0.0
        %2417 = vmatpush2.msra.mxu0 0.0
        %2418 = vmatprep.subr.mxu0 0.0
        %2419 = vmatpush2.msra.mxu0 0.0
        %2420 = vmatprep.subr.mxu0 0.0
        %2421 = vmatpush2.msra.mxu0 0.0
        %2422 = vmatprep.subr.mxu0 0.0
        %2423 = vmatpush2.msra.mxu0 0.0
        %2424 = vmatprep.subr.mxu0 0.0
        %2425 = vmatpush2.msra.mxu0 0.0
        %2426 = vmatprep.subr.mxu0 0.0
        %2427 = vmatpush2.msra.mxu0 0.0
        %2428 = vmatprep.subr.mxu0 0.0
        %2429 = vmatpush2.msra.mxu0 0.0
        %2430 = vmatprep.subr.mxu0 0.0
        %2431 = vmatpush2.msra.mxu0 0.0
        %2432 = vmatprep.subr.mxu0 0.0
        %2433 = vmatpush2.msra.mxu0 0.0
        %2434 = vmatprep.subr.mxu0 0.0
        %2435 = vmatpush2.msra.mxu0 0.0
        %2436 = vmatprep.subr.mxu0 0.0
        %2437 = vmatpush2.msra.mxu0 0.0
        %2438 = vmatprep.subr.mxu0 0.0
        %2439 = vmatpush2.msra.mxu0 0.0
        %2440 = vmatprep.subr.mxu0 0.0
        %2441 = vmatpush2.msra.mxu0 0.0
        %2442 = vmatprep.subr.mxu0 0.0
        %2443 = vmatpush2.msra.mxu0 0.0
        %2444 = vmatprep.mubr.f32.mxu0 0.0
        %2445 = vmatmul.mubr.f32.gmra.mxu0 %v2357
        %v2446 = vpop.f32.mrf.mxu0
        %v2447 = vadd.f32 0.0, %v2446
        %v2448 = vpop.f32.mrf.mxu0
        %2449 = vmatprep.mubr.f32.mxu0 0.0
        %2450 = vmatmul.mubr.f32.gmra.mxu0 %v2360
        %v2451 = vpop.f32.mrf.mxu0
        %v2452 = vadd.f32 0.0, %v2451
        %v2453 = vpop.f32.mrf.mxu0
        %2454 = vmatprep.mubr.f32.mxu0 0.0
        %2455 = vmatmul.mubr.f32.gmra.mxu0 %v2363
        %v2456 = vpop.f32.mrf.mxu0
        %v2457 = vadd.f32 0.0, %v2456
        %v2458 = vpop.f32.mrf.mxu0
        %2459 = vmatprep.mubr.f32.mxu0 0.0
        %2460 = vmatmul.mubr.f32.gmra.mxu0 %v2366
        %v2461 = vpop.f32.mrf.mxu0
        %v2462 = vadd.f32 0.0, %v2461
        %v2463 = vpop.f32.mrf.mxu0
        %2464 = vmatprep.mubr.f32.mxu0 0.0
        %2465 = vmatmul.mubr.f32.gmra.mxu0 %v2369
        %v2466 = vpop.f32.mrf.mxu0
        %v2467 = vadd.f32 0.0, %v2466
        %v2468 = vpop.f32.mrf.mxu0
        %2469 = vmatprep.mubr.f32.mxu0 0.0
        %2470 = vmatmul.mubr.f32.gmra.mxu0 %v2372
        %v2471 = vpop.f32.mrf.mxu0
        %v2472 = vadd.f32 0.0, %v2471
        %v2473 = vpop.f32.mrf.mxu0
        %2474 = vmatprep.mubr.f32.mxu0 0.0
        %2475 = vmatmul.mubr.f32.gmra.mxu0 %v2375
        %v2476 = vpop.f32.mrf.mxu0
        %v2477 = vadd.f32 0.0, %v2476
        %v2478 = vpop.f32.mrf.mxu0
        %2479 = vmatprep.mubr.f32.mxu0 0.0
        %2480 = vmatmul.mubr.f32.gmra.mxu0 %v2378
        %v2481 = vpop.f32.mrf.mxu0
        %v2482 = vadd.f32 0.0, %v2481
        %v2483 = vpop.f32.mrf.mxu0
        %2484 = vdwg.mxu0
        %v2485 = vmul.f32 %v707, %v707
        %v2486 = vmul.f32 %v712, %v712
        %v2487 = vmul.f32 %v717, %v717
        %v2488 = vmul.f32 %v722, %v722
        %v2489 = vmul.f32 %v727, %v727
        %v2490 = vmul.f32 %v732, %v732
        %v2491 = vmul.f32 %v737, %v737
        %v2492 = vmul.f32 %v742, %v742
        %v2493 = vmul.f32 %v1136, %v1136
        %v2494 = vmul.f32 %v1141, %v1141
        %v2495 = vmul.f32 %v1146, %v1146
        %v2496 = vmul.f32 %v1151, %v1151
        %v2497 = vmul.f32 %v1156, %v1156
        %v2498 = vmul.f32 %v1161, %v1161
        %v2499 = vmul.f32 %v1166, %v1166
        %v2500 = vmul.f32 %v1171, %v1171
        %v2501 = vmul.f32 %v707, %v1136
        %v2502 = vmul.f32 %v712, %v1141
        %v2503 = vmul.f32 %v717, %v1146
        %v2504 = vmul.f32 %v722, %v1151
        %v2505 = vmul.f32 %v727, %v1156
        %v2506 = vmul.f32 %v732, %v1161
        %v2507 = vmul.f32 %v737, %v1166
        %v2508 = vmul.f32 %v742, %v1171
        %v2509 = vsub.f32 %v1573, %v2485
        %v2510 = vsub.f32 %v1578, %v2486
        %v2511 = vsub.f32 %v1583, %v2487
        %v2512 = vsub.f32 %v1588, %v2488
        %v2513 = vsub.f32 %v1593, %v2489
        %v2514 = vsub.f32 %v1598, %v2490
        %v2515 = vsub.f32 %v1603, %v2491
        %v2516 = vsub.f32 %v1608, %v2492
        %v2517 = vsub.f32 %v2010, %v2493
        %v2518 = vsub.f32 %v2015, %v2494
        %v2519 = vsub.f32 %v2020, %v2495
        %v2520 = vsub.f32 %v2025, %v2496
        %v2521 = vsub.f32 %v2030, %v2497
        %v2522 = vsub.f32 %v2035, %v2498
        %v2523 = vsub.f32 %v2040, %v2499
        %v2524 = vsub.f32 %v2045, %v2500
        %v2525 = vsub.f32 %v2447, %v2501
        %v2526 = vsub.f32 %v2452, %v2502
        %v2527 = vsub.f32 %v2457, %v2503
        %v2528 = vsub.f32 %v2462, %v2504
        %v2529 = vsub.f32 %v2467, %v2505
        %v2530 = vsub.f32 %v2472, %v2506
        %v2531 = vsub.f32 %v2477, %v2507
        %v2532 = vsub.f32 %v2482, %v2508
        %v2533 = vmul.f32 %v2525, 2.0
        %v2534 = vmul.f32 %v2526, 2.0
        %v2535 = vmul.f32 %v2527, 2.0
        %v2536 = vmul.f32 %v2528, 2.0
        %v2537 = vmul.f32 %v2529, 2.0
        %v2538 = vmul.f32 %v2530, 2.0
        %v2539 = vmul.f32 %v2531, 2.0
        %v2540 = vmul.f32 %v2532, 2.0
        %v2541 = vadd.f32 %v2533, 58.5225
        %v2542 = vadd.f32 %v2534, 58.5225
        %v2543 = vadd.f32 %v2535, 58.5225
        %v2544 = vadd.f32 %v2536, 58.5225
        %v2545 = vadd.f32 %v2537, 58.5225
        %v2546 = vadd.f32 %v2538, 58.5225
        %v2547 = vadd.f32 %v2539, 58.5225
        %v2548 = vadd.f32 %v2540, 58.5225
        %v2549 = vadd.f32 %v2509, %v2517
        %v2550 = vadd.f32 %v2510, %v2518
        %v2551 = vadd.f32 %v2511, %v2519
        %v2552 = vadd.f32 %v2512, %v2520
        %v2553 = vadd.f32 %v2513, %v2521
        %v2554 = vadd.f32 %v2514, %v2522
        %v2555 = vadd.f32 %v2515, %v2523
        %v2556 = vadd.f32 %v2516, %v2524
        %v2557 = vadd.f32 %v2549, 58.5225
        %v2558 = vadd.f32 %v2550, 58.5225
        %v2559 = vadd.f32 %v2551, 58.5225
        %v2560 = vadd.f32 %v2552, 58.5225
        %v2561 = vadd.f32 %v2553, 58.5225
        %v2562 = vadd.f32 %v2554, 58.5225
        %v2563 = vadd.f32 %v2555, 58.5225
        %v2564 = vadd.f32 %v2556, 58.5225
        %v2565 = vrcp.pop %v2557
        %v2566 = vrcp.pop %v2558
        %v2567 = vrcp.pop %v2559
        %v2568 = vrcp.pop %v2560
        %v2569 = vrcp.pop %v2561
        %v2570 = vrcp.pop %v2562
        %v2571 = vrcp.pop %v2563
        %v2572 = vrcp.pop %v2564
        %v2573 = vmul.f32 %v2541, %v2565
        %v2574 = vmul.f32 %v2542, %v2566
        %v2575 = vmul.f32 %v2543, %v2567
        %v2576 = vmul.f32 %v2544, %v2568
        %v2577 = vmul.f32 %v2545, %v2569
        %v2578 = vmul.f32 %v2546, %v2570
        %v2579 = vmul.f32 %v2547, %v2571
        %v2580 = vmul.f32 %v2548, %v2572
        %v2581 = vmul.f32 %v2501, 2.0
        %v2582 = vmul.f32 %v2502, 2.0
        %v2583 = vmul.f32 %v2503, 2.0
        %v2584 = vmul.f32 %v2504, 2.0
        %v2585 = vmul.f32 %v2505, 2.0
        %v2586 = vmul.f32 %v2506, 2.0
        %v2587 = vmul.f32 %v2507, 2.0
        %v2588 = vmul.f32 %v2508, 2.0
        %v2589 = vadd.f32 %v2581, 6.5025
        %v2590 = vadd.f32 %v2582, 6.5025
        %v2591 = vadd.f32 %v2583, 6.5025
        %v2592 = vadd.f32 %v2584, 6.5025
        %v2593 = vadd.f32 %v2585, 6.5025
        %v2594 = vadd.f32 %v2586, 6.5025
        %v2595 = vadd.f32 %v2587, 6.5025
        %v2596 = vadd.f32 %v2588, 6.5025
        %v2597 = vadd.f32 %v2485, %v2493
        %v2598 = vadd.f32 %v2486, %v2494
        %v2599 = vadd.f32 %v2487, %v2495
        %v2600 = vadd.f32 %v2488, %v2496
        %v2601 = vadd.f32 %v2489, %v2497
        %v2602 = vadd.f32 %v2490, %v2498
        %v2603 = vadd.f32 %v2491, %v2499
        %v2604 = vadd.f32 %v2492, %v2500
        %v2605 = vadd.f32 %v2597, 6.5025
        %v2606 = vadd.f32 %v2598, 6.5025
        %v2607 = vadd.f32 %v2599, 6.5025
        %v2608 = vadd.f32 %v2600, 6.5025
        %v2609 = vadd.f32 %v2601, 6.5025
        %v2610 = vadd.f32 %v2602, 6.5025
        %v2611 = vadd.f32 %v2603, 6.5025
        %v2612 = vadd.f32 %v2604, 6.5025
        %v2613 = vrcp.pop %v2605
        %v2614 = vrcp.pop %v2606
        %v2615 = vrcp.pop %v2607
        %v2616 = vrcp.pop %v2608
        %v2617 = vrcp.pop %v2609
        %v2618 = vrcp.pop %v2610
        %v2619 = vrcp.pop %v2611
        %v2620 = vrcp.pop %v2612
        %v2621 = vmul.f32 %v2589, %v2613
        %v2622 = vmul.f32 %v2590, %v2614
        %v2623 = vmul.f32 %v2591, %v2615
        %v2624 = vmul.f32 %v2592, %v2616
        %v2625 = vmul.f32 %v2593, %v2617
        %v2626 = vmul.f32 %v2594, %v2618
        %v2627 = vmul.f32 %v2595, %v2619
        %v2628 = vmul.f32 %v2596, %v2620
        %v2629 = vmul.f32 %v2621, %v2573
        %v2630 = vmul.f32 %v2622, %v2574
        %v2631 = vmul.f32 %v2623, %v2575
        %v2632 = vmul.f32 %v2624, %v2576
        %v2633 = vmul.f32 %v2625, %v2577
        %v2634 = vmul.f32 %v2626, %v2578
        %v2635 = vmul.f32 %v2627, %v2579
        %v2636 = vmul.f32 %v2628, %v2580
        %v2637 = vlaneseq
        %v2638 = vshrl.u32 %v2637, 7
        %v2639 = vadd.s32 %v2638, 8
        %v2640 = vlaneseq
        %v2641 = vand.u32 %v2640, 127
        %vm2642 = vcmp.lt.s32.totalorder %v2638, 14
        %vm2643 = vcmp.lt.s32.totalorder %v2639, 14
        %vm2644 = vcmp.lt.s32.totalorder %v2641, 10
        %vm2645 = vmand %vm2642, %vm2644
        %vm2646 = vmand %vm2643, %vm2644
        %v2647 = vsel %vm2645, %v2629, 0.0
        %v2648 = vsel %vm2646, %v2630, 0.0
        %v2649 = vsel %vm2645, %v2631, 0.0
        %v2650 = vsel %vm2646, %v2632, 0.0
        %v2651 = vsel %vm2645, %v2633, 0.0
        %v2652 = vsel %vm2646, %v2634, 0.0
        %v2653 = vsel %vm2645, %v2635, 0.0
        %v2654 = vsel %vm2646, %v2636, 0.0
        %v2655 = vmul.u32 %v2638, 16
        %vm2656 = vcmp.ge.s32.totalorder %v2641, %v2655
        %v2657 = vadd.s32 %v2655, 16
        %vm2658 = vcmp.lt.s32.totalorder %v2641, %v2657
        %vm2659 = vmand %vm2656, %vm2658
        %v2660 = vsel %vm2659, 1, 0
        %v2661 = vcvt.s32.f32 %v2660
        %vm2662 = vcmask 523264
        %v2664 = vsel %vm2662, %v2661, 0
        %2666 = vmatprep.subr.mxu0 0.0
        %2667 = vmatpush1.msra.mxu0 0.0
        %2668 = vmatprep.subr.mxu0 0.0
        %2669 = vmatpush1.msra.mxu0 0.0
        %2670 = vmatprep.subr.mxu0 0.0
        %2671 = vmatpush1.msra.mxu0 0.0
        %2672 = vmatprep.subr.mxu0 0.0
        %2673 = vmatpush1.msra.mxu0 0.0
        %2674 = vmatprep.subr.mxu0 0.0
        %2675 = vmatpush1.msra.mxu0 0.0
        %2676 = vmatprep.subr.mxu0 0.0
        %2677 = vmatpush1.msra.mxu0 0.0
        %2678 = vmatprep.subr.mxu0 0.0
        %2679 = vmatpush1.msra.mxu0 0.0
        %2680 = vmatprep.subr.mxu0 0.0
        %2681 = vmatpush1.msra.mxu0 0.0
        %2682 = vmatprep.subr.mxu0 0.0
        %2683 = vmatpush1.msra.mxu0 %v2654
        %2684 = vmatprep.subr.mxu0 0.0
        %2685 = vmatpush1.msra.mxu0 %v2653
        %2686 = vmatprep.subr.mxu0 0.0
        %2687 = vmatpush1.msra.mxu0 %v2652
        %2688 = vmatprep.subr.mxu0 0.0
        %2689 = vmatpush1.msra.mxu0 %v2651
        %2690 = vmatprep.subr.mxu0 0.0
        %2691 = vmatpush1.msra.mxu0 %v2650
        %2692 = vmatprep.subr.mxu0 0.0
        %2693 = vmatpush1.msra.mxu0 %v2649
        %2694 = vmatprep.subr.mxu0 0.0
        %2695 = vmatpush1.msra.mxu0 %v2648
        %2696 = vmatprep.subr.mxu0 0.0
        %2697 = vmatpush1.msra.mxu0 %v2647
        %2698 = vmatprep.subr.mxu0 0.0
        %2699 = vmatpush2.msra.mxu0 0.0
        %2700 = vmatprep.subr.mxu0 0.0
        %2701 = vmatpush2.msra.mxu0 0.0
        %2702 = vmatprep.subr.mxu0 0.0
        %2703 = vmatpush2.msra.mxu0 0.0
        %2704 = vmatprep.subr.mxu0 0.0
        %2705 = vmatpush2.msra.mxu0 0.0
        %2706 = vmatprep.subr.mxu0 0.0
        %2707 = vmatpush2.msra.mxu0 0.0
        %2708 = vmatprep.subr.mxu0 0.0
        %2709 = vmatpush2.msra.mxu0 0.0
        %2710 = vmatprep.subr.mxu0 0.0
        %2711 = vmatpush2.msra.mxu0 0.0
        %2712 = vmatprep.subr.mxu0 0.0
        %2713 = vmatpush2.msra.mxu0 0.0
        %2714 = vmatprep.subr.mxu0 0.0
        %2715 = vmatpush2.msra.mxu0 0.0
        %2716 = vmatprep.subr.mxu0 0.0
        %2717 = vmatpush2.msra.mxu0 0.0
        %2718 = vmatprep.subr.mxu0 0.0
        %2719 = vmatpush2.msra.mxu0 0.0
        %2720 = vmatprep.subr.mxu0 0.0
        %2721 = vmatpush2.msra.mxu0 0.0
        %2722 = vmatprep.subr.mxu0 0.0
        %2723 = vmatpush2.msra.mxu0 0.0
        %2724 = vmatprep.subr.mxu0 0.0
        %2725 = vmatpush2.msra.mxu0 0.0
        %2726 = vmatprep.subr.mxu0 0.0
        %2727 = vmatpush2.msra.mxu0 0.0
        %2728 = vmatprep.subr.mxu0 0.0
        %2729 = vmatpush2.msra.mxu0 0.0
        %2730 = vmatprep.mubr.f32.mxu0 0.0
        %2731 = vmatmul.mubr.f32.gmra.mxu0 %v2664
        %v2732 = vpop.f32.mrf.mxu0
        %v2733 = vadd.f32 0.0, %v2732
        %v2734 = vpop.f32.mrf.mxu0
        %2735 = vdwg.mxu0
        %vm2736 = vcmask 1043456
        %v2737 = vsel %vm2736, %v2733, 0.0
        %2738 = vadd.xlane.f32.xlu0 %v2737
        %v2739 = vpop.xlane.xlu0 %2738
        %v2740 = vadd.f32 %v2739, 56.0
        %v2741 = vmul.f32 %v2740, 0.0051020407
        %vm2742 = vcmask 3072
        %2743 = vst.msk [vmem:[%s288] sm:$0xf] %vm2742, %v2741
        %p2744 = scmp.lt.s32.totalorder %s22, 1
        %s2745 = scalar_select %p2744, %s22, 1
        %s2746 = smul.addr %s2745, 4
        %s2747 = scalar_lea.vmem %s4, %s2746
        // Predicated region
        $region53: #{tpu_custom_call.1} parent=35 // pred_check
          %p2748 = pneg %p134
        $region54: #{tpu_custom_call.1} parent=35 // pred_check_branch
          %2750 = sbr.rel (%p2748) target = $region56
        $region55: #{tpu_custom_call.1} parent=35 // pred_region
          _
        $region56: #{tpu_custom_call.1} parent=35 // pred_fallthru
          _
      $region36: #{tpu_custom_call.1} parent=5 // pred_fallthru
        _
      %p2751 = scmp.le.s32.totalorder 2, %s17
      // Predicated region
      $region57: #{tpu_custom_call.1} parent=5 // pred_check
        %p2752 = pneg %p2751
      $region58: #{tpu_custom_call.1} parent=5 // pred_check_branch
        %2754 = sbr.rel (%p2752) target = $region60
      $region59: #{tpu_custom_call.1} parent=5 // pred_region
        %s2755 = ssub.s32 %s17, 2
        // Predicated region
        $region61: #{tpu_custom_call.1} parent=59 // pred_check
          %p2756 = pneg %p140
        $region62: #{tpu_custom_call.1} parent=59 // pred_check_branch
          %2758 = sbr.rel (%p2756) target = $region64
        $region63: #{tpu_custom_call.1} parent=59 // pred_region
          %p2759 = scmp.lt.s32.totalorder %s23, 1
          %s2760 = scalar_select %p2759, %s23, 1
          %s2761 = smul.addr %s2760, 4
          %s2762 = scalar_lea.vmem %s4, %s2761
        $region64: #{tpu_custom_call.1} parent=59 // pred_fallthru
          _
      $region60: #{tpu_custom_call.1} parent=5 // pred_fallthru
        _
    $region6: #{tpu_custom_call.1} parent=1 // loop_footer
      %s21 = sadd.s32 1, %s17
    $region7: #{tpu_custom_call.1} parent=1 // loop_footer_branch
      %16 = sbr.rel target = $region3
    $region8: #{tpu_custom_call.1} parent=1 // loop_exit
      _
    %2763 = vsyncpa [#allocation3], 1
    %s2764 = scalar_lea.sflag [#allocation3], 1
    %2765 = vsyncpa %s2764, 1
    %2766 = vsyncpa [#allocation5], 1
    %s2767 = scalar_lea.sflag [#allocation5], 1
    %2768 = vsyncpa %s2767, 1
    %2769 = vsyncpa [#allocation8], 1

</llo_original>
